<compile_context>
chip_gen: v7x
topology: tpu7x:2x2x1
jax: 0.10.0
libtpu: 0.0.40
codegen_flags: <defaults>
</compile_context>

<pallas_src>
import functools

import jax
import jax.numpy as jnp
from jax.experimental import pallas as pl
from jax.experimental.pallas import tpu as pltpu


# ---- small, module-consistent hyperparameters -------------------------------
BATCH = 2
SEQ = 16           # T (<= block_size in the reference module)
N_EMBD = 64        # C (scaled down from 384 for a small runnable example)
NUM_HEADS = 4      # H
HEAD_SIZE = 16     # D


# ------------------------------- fused kernel --------------------------------
def _mha_fused_kernel(x_ref, wqkv_ref, wproj_ref, bproj_ref, o_ref, *,
                      batch, seq, num_heads):
    # x_ref     : (B*T, C)     bf16
    # wqkv_ref  : (C, 3*H*D)   bf16   (columns: [Q heads | K heads | V heads];
    #                                  Q columns pre-scaled by D**-0.5)
    # wproj_ref : (H*D, C)     bf16
    # bproj_ref : (1, C)       f32
    # o_ref     : (B*T, C)     bf16
    T = seq
    H = num_heads
    HD = wproj_ref.shape[0]
    D = HD // H

    # One MXU matmul computes q/k/v for every (batch, head): (B*T, 3*H*D), f32 acc.
    qkv = jnp.dot(x_ref[...], wqkv_ref[...], preferred_element_type=jnp.float32)
    qkv_bf = qkv.astype(jnp.bfloat16)            # bf16 operands for the attention matmuls

    row = jax.lax.broadcasted_iota(jnp.int32, (T, T), 0)
    col = jax.lax.broadcasted_iota(jnp.int32, (T, T), 1)
    causal = col <= row
    neg_big = jnp.float32(-1e30)                 # finite: NaN-proof masking

    bias = bproj_ref[...]                        # (1, C) f32
    wproj = wproj_ref[...]                       # (H*D, C) bf16

    # Static (small) unrolled loops over batch and heads.
    for b in range(batch):
        r0 = b * T
        acc = None
        for h in range(H):
            qh = qkv_bf[r0:r0 + T, h * D:(h + 1) * D]                      # (T, D)
            kh = qkv_bf[r0:r0 + T, HD + h * D:HD + (h + 1) * D]            # (T, D)
            vh = qkv_bf[r0:r0 + T, 2 * HD + h * D:2 * HD + (h + 1) * D]    # (T, D)

            # q @ k^T without materializing a transpose; scale already folded
            # into the Q weights.  bf16 operands, f32 accumulation.
            wei = jax.lax.dot_general(
                qh, kh, (((1,), (1,)), ((), ())),
                preferred_element_type=jnp.float32)                        # (T, T)
            wei = jnp.where(causal, wei, neg_big)

            # numerically-stable softmax (f32 on VPU; exp/reciprocal on EUP)
            m = jnp.max(wei, axis=-1, keepdims=True)
            p = jnp.exp(wei - m)
            denom = jnp.sum(p, axis=-1, keepdims=True)
            probs = p * pl.reciprocal(denom, approx=True)

            head = jnp.dot(probs.astype(jnp.bfloat16), vh,
                           preferred_element_type=jnp.float32)             # (T, D)

            # Per-head accumulation into the output projection: no lane-dim
            # concat of narrow (T, D) tiles.
            contrib = jnp.dot(head.astype(jnp.bfloat16),
                              wproj[h * D:(h + 1) * D, :],
                              preferred_element_type=jnp.float32)          # (T, C)
            acc = contrib if acc is None else acc + contrib

        o_ref[r0:r0 + T, :] = (acc + bias).astype(o_ref.dtype)
    # TODO(synk): attention / residual dropout skipped (eval-mode identity).


# ------------------------------ wrapper ---------------------------------------
def multi_head_attention(x, wq, wk, wv, w_proj, b_proj):
    """x: (B, T, C);  wq/wk/wv: (H, C, D);  w_proj: (H*D, C);  b_proj: (C,)."""
    B, T, C = x.shape
    H, _, D = wq.shape
    HD = H * D
    BT = B * T

    # pack per-head weights: (H, C, D) -> (C, H*D) with head-major columns,
    # then stack Q|K|V side by side -> (C, 3*H*D).  Fold 1/sqrt(D) into Q
    # (exact for D=16 -> 0.25, even in bf16).
    def pack(w):
        return jnp.transpose(w, (1, 0, 2)).reshape(C, HD)

    scale = jnp.float32(D ** -0.5)
    wqkv = jnp.concatenate([pack(wq) * scale, pack(wk), pack(wv)], axis=-1)

    # bf16 MXU operands; bias / accumulation / softmax stay f32
    x_bf = x.reshape(BT, C).astype(jnp.bfloat16)        # layout-preserving reshape
    wqkv_bf = wqkv.astype(jnp.bfloat16)
    wproj_bf = w_proj.astype(jnp.bfloat16)
    bproj2d = b_proj.reshape(1, C).astype(jnp.float32)

    kernel = functools.partial(_mha_fused_kernel, batch=B, seq=T, num_heads=H)

    flops = 2 * B * (T * C * 3 * HD + 2 * H * T * T * D + T * HD * C)
    bytes_accessed = 2 * (BT * C + C * 3 * HD + HD * C + BT * C) + 4 * C
    cost = pl.CostEstimate(flops=flops,
                           transcendentals=B * H * T * T,
                           bytes_accessed=bytes_accessed)

    out2d = pl.pallas_call(
        kernel,
        out_shape=jax.ShapeDtypeStruct((BT, C), jnp.bfloat16),
        grid_spec=pl.GridSpec(
            grid=(1,),                                   # single step: all B at once
            in_specs=[
                pl.BlockSpec((BT, C), lambda i: (0, 0)),        # x (flattened B*T)
                pl.BlockSpec((C, 3 * HD), lambda i: (0, 0)),    # packed QKV W
                pl.BlockSpec((HD, C), lambda i: (0, 0)),        # proj W
                pl.BlockSpec((1, C), lambda i: (0, 0)),         # proj bias
            ],
            out_specs=pl.BlockSpec((BT, C), lambda i: (0, 0)),
        ),
        compiler_params=pltpu.CompilerParams(
            dimension_semantics=("arbitrary",)),
        cost_estimate=cost,
    )(x_bf, wqkv_bf, wproj_bf, bproj2d)

    return out2d.reshape(B, T, C)


# ------------------------------ reference -------------------------------------
def _reference(x, wq, wk, wv, w_proj, b_proj):
    """Pure-JAX f32 reference matching the PyTorch forward (dropout = eval/identity)."""
    B, T, C = x.shape
    H, _, D = wq.shape
    q = jnp.einsum("btc,hcd->bhtd", x, wq)
    k = jnp.einsum("btc,hcd->bhtd", x, wk)
    v = jnp.einsum("btc,hcd->bhtd", x, wv)
    wei = jnp.einsum("bhqd,bhkd->bhqk", q, k) * (D ** -0.5)
    mask = jnp.tril(jnp.ones((T, T), dtype=bool))
    wei = jnp.where(mask, wei, -jnp.inf)
    wei = jax.nn.softmax(wei, axis=-1)
    out = jnp.einsum("bhqk,bhkd->bhqd", wei, v)                      # (B, H, T, D)
    out = jnp.transpose(out, (0, 2, 1, 3)).reshape(B, T, H * D)
    return out @ w_proj + b_proj


if __name__ == "__main__":
    key = jax.random.PRNGKey(0)
    kx, kq, kk, kv, kp, kb = jax.random.split(key, 6)

    # deterministic synthetic parameters (Linear(no bias) weights stored as (C, D),
    # i.e. already transposed so the kernel computes x @ W, matching x @ W_pt.T)
    x = jax.random.normal(kx, (BATCH, SEQ, N_EMBD), dtype=jnp.float32)
    wq = jax.random.normal(kq, (NUM_HEADS, N_EMBD, HEAD_SIZE), dtype=jnp.float32) * 0.05
    wk = jax.random.normal(kk, (NUM_HEADS, N_EMBD, HEAD_SIZE), dtype=jnp.float32) * 0.05
    wv = jax.random.normal(kv, (NUM_HEADS, N_EMBD, HEAD_SIZE), dtype=jnp.float32) * 0.05
    w_proj = jax.random.normal(kp, (NUM_HEADS * HEAD_SIZE, N_EMBD), dtype=jnp.float32) * 0.05
    b_proj = jax.random.normal(kb, (N_EMBD,), dtype=jnp.float32) * 0.05

    out = multi_head_attention(x, wq, wk, wv, w_proj, b_proj)
    out = jax.block_until_ready(out)

    ref = _reference(x, wq, wk, wv, w_proj, b_proj)
    assert out.shape == (BATCH, SEQ, N_EMBD)
    # bf16 MXU operands (all matmuls), bf16 output, and approx reciprocal =>
    # loose-but-meaningful tolerance against the pure-f32 reference.
    assert jnp.allclose(out.astype(jnp.float32), ref, atol=5e-2, rtol=5e-2), \
        "mismatch vs JAX reference"

    print("KERNEL_OK")
</pallas_src>

<mosaic_0001>
module attributes {stable_mosaic.version = 11 : i64} {
  func.func @_mha_fused_kernel(%arg0: i32, %arg1: memref<32x64xbf16, #tpu.memory_space<vmem>>, %arg2: memref<64x192xbf16, #tpu.memory_space<vmem>>, %arg3: memref<64x64xbf16, #tpu.memory_space<vmem>>, %arg4: memref<1x64xf32, #tpu.memory_space<vmem>>, %arg5: memref<32x64xbf16, #tpu.memory_space<vmem>>) attributes {dimension_semantics = [#tpu.dimension_semantics<arbitrary>], iteration_bounds = array<i64: 1>, scalar_prefetch = 0 : i64, scratch_operands = 0 : i64, tpu.core_type = #tpu.core_type<tc>, window_params = [{pipeline_mode = #tpu.pipeline_mode<synchronous>, transform_indices = @transform_0, window_bounds = array<i64: 32, 64>}, {pipeline_mode = #tpu.pipeline_mode<synchronous>, transform_indices = @transform_1, window_bounds = array<i64: 64, 192>}, {pipeline_mode = #tpu.pipeline_mode<synchronous>, transform_indices = @transform_2, window_bounds = array<i64: 64, 64>}, {pipeline_mode = #tpu.pipeline_mode<synchronous>, transform_indices = @transform_3, window_bounds = array<i64: 1, 64>}, {pipeline_mode = #tpu.pipeline_mode<synchronous>, transform_indices = @transform_4, window_bounds = array<i64: 32, 64>}]} {
    %c0 = arith.constant 0 : index
    %c0_0 = arith.constant 0 : index
    %0 = vector.load %arg1[%c0, %c0_0] : memref<32x64xbf16, #tpu.memory_space<vmem>>, vector<32x64xbf16>
    %c0_1 = arith.constant 0 : index
    %c0_2 = arith.constant 0 : index
    %1 = vector.load %arg2[%c0_1, %c0_2] : memref<64x192xbf16, #tpu.memory_space<vmem>>, vector<64x192xbf16>
    %cst = arith.constant dense<0.000000e+00> : vector<32x192xf32>
    %2 = tpu.matmul %0, %1, %cst {dimension_numbers = #tpu.dot_dimension_numbers<[1], [0], [0], [1], [0, 0, 1, 1], [], []>} : vector<32x64xbf16>, vector<64x192xbf16>, vector<32x192xf32> -> vector<32x192xf32>
    %3 = arith.truncf %2 : vector<32x192xf32> to vector<32x192xbf16>
    %4 = tpu.iota {dimensions = array<i32: 0>} : vector<16x16xi32>
    %5 = tpu.iota {dimensions = array<i32: 1>} : vector<16x16xi32>
    %6 = arith.cmpi sle, %5, %4 : vector<16x16xi32>
    %c0_3 = arith.constant 0 : index
    %c0_4 = arith.constant 0 : index
    %7 = vector.load %arg4[%c0_3, %c0_4] : memref<1x64xf32, #tpu.memory_space<vmem>>, vector<1x64xf32>
    %c0_5 = arith.constant 0 : index
    %c0_6 = arith.constant 0 : index
    %8 = vector.load %arg3[%c0_5, %c0_6] : memref<64x64xbf16, #tpu.memory_space<vmem>>, vector<64x64xbf16>
    %9 = vector.extract_strided_slice %3 {offsets = [0, 0], sizes = [16, 16], strides = [1, 1]} : vector<32x192xbf16> to vector<16x16xbf16>
    %10 = vector.extract_strided_slice %3 {offsets = [0, 64], sizes = [16, 16], strides = [1, 1]} : vector<32x192xbf16> to vector<16x16xbf16>
    %11 = vector.extract_strided_slice %3 {offsets = [0, 128], sizes = [16, 16], strides = [1, 1]} : vector<32x192xbf16> to vector<16x16xbf16>
    %cst_7 = arith.constant dense<0.000000e+00> : vector<16x16xf32>
    %12 = tpu.matmul %9, %10, %cst_7 {dimension_numbers = #tpu.dot_dimension_numbers<[1], [1], [0], [0], [0, 0, 1, 0], [], []>} : vector<16x16xbf16>, vector<16x16xbf16>, vector<16x16xf32> -> vector<16x16xf32>
    %cst_8 = arith.constant -1.000000e+30 : f32
    %13 = vector.broadcast %cst_8 : f32 to vector<16x16xf32>
    %14 = arith.select %6, %12, %13 : vector<16x16xi1>, vector<16x16xf32>
    %cst_9 = arith.constant dense<0xFF800000> : vector<16xf32>
    %15 = vector.multi_reduction <maximumf>, %14, %cst_9 [1] : vector<16x16xf32> to vector<16xf32>
    %16 = vector.shape_cast %15 : vector<16xf32> to vector<16x1xf32>
    %17 = vector.broadcast %16 : vector<16x1xf32> to vector<16x16xf32>
    %18 = arith.subf %14, %17 : vector<16x16xf32>
    %19 = math.exp %18 : vector<16x16xf32>
    %cst_10 = arith.constant dense<0.000000e+00> : vector<16xf32>
    %20 = vector.multi_reduction <add>, %19, %cst_10 [1] : vector<16x16xf32> to vector<16xf32>
    %21 = vector.shape_cast %20 : vector<16xf32> to vector<16x1xf32>
    %22 = tpu.reciprocal %21 {approx = true} : vector<16x1xf32> -> vector<16x1xf32>
    %23 = vector.broadcast %22 : vector<16x1xf32> to vector<16x16xf32>
    %24 = arith.mulf %19, %23 : vector<16x16xf32>
    %25 = arith.truncf %24 : vector<16x16xf32> to vector<16x16xbf16>
    %cst_11 = arith.constant dense<0.000000e+00> : vector<16x16xf32>
    %26 = tpu.matmul %25, %11, %cst_11 {dimension_numbers = #tpu.dot_dimension_numbers<[1], [0], [0], [1], [0, 0, 1, 1], [], []>} : vector<16x16xbf16>, vector<16x16xbf16>, vector<16x16xf32> -> vector<16x16xf32>
    %27 = arith.truncf %26 : vector<16x16xf32> to vector<16x16xbf16>
    %28 = vector.extract_strided_slice %8 {offsets = [0, 0], sizes = [16, 64], strides = [1, 1]} : vector<64x64xbf16> to vector<16x64xbf16>
    %cst_12 = arith.constant dense<0.000000e+00> : vector<16x64xf32>
    %29 = tpu.matmul %27, %28, %cst_12 {dimension_numbers = #tpu.dot_dimension_numbers<[1], [0], [0], [1], [0, 0, 1, 1], [], []>} : vector<16x16xbf16>, vector<16x64xbf16>, vector<16x64xf32> -> vector<16x64xf32>
    %30 = vector.extract_strided_slice %3 {offsets = [0, 16], sizes = [16, 16], strides = [1, 1]} : vector<32x192xbf16> to vector<16x16xbf16>
    %31 = vector.extract_strided_slice %3 {offsets = [0, 80], sizes = [16, 16], strides = [1, 1]} : vector<32x192xbf16> to vector<16x16xbf16>
    %32 = vector.extract_strided_slice %3 {offsets = [0, 144], sizes = [16, 16], strides = [1, 1]} : vector<32x192xbf16> to vector<16x16xbf16>
    %cst_13 = arith.constant dense<0.000000e+00> : vector<16x16xf32>
    %33 = tpu.matmul %30, %31, %cst_13 {dimension_numbers = #tpu.dot_dimension_numbers<[1], [1], [0], [0], [0, 0, 1, 0], [], []>} : vector<16x16xbf16>, vector<16x16xbf16>, vector<16x16xf32> -> vector<16x16xf32>
    %cst_14 = arith.constant -1.000000e+30 : f32
    %34 = vector.broadcast %cst_14 : f32 to vector<16x16xf32>
    %35 = arith.select %6, %33, %34 : vector<16x16xi1>, vector<16x16xf32>
    %cst_15 = arith.constant dense<0xFF800000> : vector<16xf32>
    %36 = vector.multi_reduction <maximumf>, %35, %cst_15 [1] : vector<16x16xf32> to vector<16xf32>
    %37 = vector.shape_cast %36 : vector<16xf32> to vector<16x1xf32>
    %38 = vector.broadcast %37 : vector<16x1xf32> to vector<16x16xf32>
    %39 = arith.subf %35, %38 : vector<16x16xf32>
    %40 = math.exp %39 : vector<16x16xf32>
    %cst_16 = arith.constant dense<0.000000e+00> : vector<16xf32>
    %41 = vector.multi_reduction <add>, %40, %cst_16 [1] : vector<16x16xf32> to vector<16xf32>
    %42 = vector.shape_cast %41 : vector<16xf32> to vector<16x1xf32>
    %43 = tpu.reciprocal %42 {approx = true} : vector<16x1xf32> -> vector<16x1xf32>
    %44 = vector.broadcast %43 : vector<16x1xf32> to vector<16x16xf32>
    %45 = arith.mulf %40, %44 : vector<16x16xf32>
    %46 = arith.truncf %45 : vector<16x16xf32> to vector<16x16xbf16>
    %cst_17 = arith.constant dense<0.000000e+00> : vector<16x16xf32>
    %47 = tpu.matmul %46, %32, %cst_17 {dimension_numbers = #tpu.dot_dimension_numbers<[1], [0], [0], [1], [0, 0, 1, 1], [], []>} : vector<16x16xbf16>, vector<16x16xbf16>, vector<16x16xf32> -> vector<16x16xf32>
    %48 = arith.truncf %47 : vector<16x16xf32> to vector<16x16xbf16>
    %49 = vector.extract_strided_slice %8 {offsets = [16, 0], sizes = [16, 64], strides = [1, 1]} : vector<64x64xbf16> to vector<16x64xbf16>
    %cst_18 = arith.constant dense<0.000000e+00> : vector<16x64xf32>
    %50 = tpu.matmul %48, %49, %cst_18 {dimension_numbers = #tpu.dot_dimension_numbers<[1], [0], [0], [1], [0, 0, 1, 1], [], []>} : vector<16x16xbf16>, vector<16x64xbf16>, vector<16x64xf32> -> vector<16x64xf32>
    %51 = arith.addf %29, %50 : vector<16x64xf32>
    %52 = vector.extract_strided_slice %3 {offsets = [0, 32], sizes = [16, 16], strides = [1, 1]} : vector<32x192xbf16> to vector<16x16xbf16>
    %53 = vector.extract_strided_slice %3 {offsets = [0, 96], sizes = [16, 16], strides = [1, 1]} : vector<32x192xbf16> to vector<16x16xbf16>
    %54 = vector.extract_strided_slice %3 {offsets = [0, 160], sizes = [16, 16], strides = [1, 1]} : vector<32x192xbf16> to vector<16x16xbf16>
    %cst_19 = arith.constant dense<0.000000e+00> : vector<16x16xf32>
    %55 = tpu.matmul %52, %53, %cst_19 {dimension_numbers = #tpu.dot_dimension_numbers<[1], [1], [0], [0], [0, 0, 1, 0], [], []>} : vector<16x16xbf16>, vector<16x16xbf16>, vector<16x16xf32> -> vector<16x16xf32>
    %cst_20 = arith.constant -1.000000e+30 : f32
    %56 = vector.broadcast %cst_20 : f32 to vector<16x16xf32>
    %57 = arith.select %6, %55, %56 : vector<16x16xi1>, vector<16x16xf32>
    %cst_21 = arith.constant dense<0xFF800000> : vector<16xf32>
    %58 = vector.multi_reduction <maximumf>, %57, %cst_21 [1] : vector<16x16xf32> to vector<16xf32>
    %59 = vector.shape_cast %58 : vector<16xf32> to vector<16x1xf32>
    %60 = vector.broadcast %59 : vector<16x1xf32> to vector<16x16xf32>
    %61 = arith.subf %57, %60 : vector<16x16xf32>
    %62 = math.exp %61 : vector<16x16xf32>
    %cst_22 = arith.constant dense<0.000000e+00> : vector<16xf32>
    %63 = vector.multi_reduction <add>, %62, %cst_22 [1] : vector<16x16xf32> to vector<16xf32>
    %64 = vector.shape_cast %63 : vector<16xf32> to vector<16x1xf32>
    %65 = tpu.reciprocal %64 {approx = true} : vector<16x1xf32> -> vector<16x1xf32>
    %66 = vector.broadcast %65 : vector<16x1xf32> to vector<16x16xf32>
    %67 = arith.mulf %62, %66 : vector<16x16xf32>
    %68 = arith.truncf %67 : vector<16x16xf32> to vector<16x16xbf16>
    %cst_23 = arith.constant dense<0.000000e+00> : vector<16x16xf32>
    %69 = tpu.matmul %68, %54, %cst_23 {dimension_numbers = #tpu.dot_dimension_numbers<[1], [0], [0], [1], [0, 0, 1, 1], [], []>} : vector<16x16xbf16>, vector<16x16xbf16>, vector<16x16xf32> -> vector<16x16xf32>
    %70 = arith.truncf %69 : vector<16x16xf32> to vector<16x16xbf16>
    %71 = vector.extract_strided_slice %8 {offsets = [32, 0], sizes = [16, 64], strides = [1, 1]} : vector<64x64xbf16> to vector<16x64xbf16>
    %cst_24 = arith.constant dense<0.000000e+00> : vector<16x64xf32>
    %72 = tpu.matmul %70, %71, %cst_24 {dimension_numbers = #tpu.dot_dimension_numbers<[1], [0], [0], [1], [0, 0, 1, 1], [], []>} : vector<16x16xbf16>, vector<16x64xbf16>, vector<16x64xf32> -> vector<16x64xf32>
    %73 = arith.addf %51, %72 : vector<16x64xf32>
    %74 = vector.extract_strided_slice %3 {offsets = [0, 48], sizes = [16, 16], strides = [1, 1]} : vector<32x192xbf16> to vector<16x16xbf16>
    %75 = vector.extract_strided_slice %3 {offsets = [0, 112], sizes = [16, 16], strides = [1, 1]} : vector<32x192xbf16> to vector<16x16xbf16>
    %76 = vector.extract_strided_slice %3 {offsets = [0, 176], sizes = [16, 16], strides = [1, 1]} : vector<32x192xbf16> to vector<16x16xbf16>
    %cst_25 = arith.constant dense<0.000000e+00> : vector<16x16xf32>
    %77 = tpu.matmul %74, %75, %cst_25 {dimension_numbers = #tpu.dot_dimension_numbers<[1], [1], [0], [0], [0, 0, 1, 0], [], []>} : vector<16x16xbf16>, vector<16x16xbf16>, vector<16x16xf32> -> vector<16x16xf32>
    %cst_26 = arith.constant -1.000000e+30 : f32
    %78 = vector.broadcast %cst_26 : f32 to vector<16x16xf32>
    %79 = arith.select %6, %77, %78 : vector<16x16xi1>, vector<16x16xf32>
    %cst_27 = arith.constant dense<0xFF800000> : vector<16xf32>
    %80 = vector.multi_reduction <maximumf>, %79, %cst_27 [1] : vector<16x16xf32> to vector<16xf32>
    %81 = vector.shape_cast %80 : vector<16xf32> to vector<16x1xf32>
    %82 = vector.broadcast %81 : vector<16x1xf32> to vector<16x16xf32>
    %83 = arith.subf %79, %82 : vector<16x16xf32>
    %84 = math.exp %83 : vector<16x16xf32>
    %cst_28 = arith.constant dense<0.000000e+00> : vector<16xf32>
    %85 = vector.multi_reduction <add>, %84, %cst_28 [1] : vector<16x16xf32> to vector<16xf32>
    %86 = vector.shape_cast %85 : vector<16xf32> to vector<16x1xf32>
    %87 = tpu.reciprocal %86 {approx = true} : vector<16x1xf32> -> vector<16x1xf32>
    %88 = vector.broadcast %87 : vector<16x1xf32> to vector<16x16xf32>
    %89 = arith.mulf %84, %88 : vector<16x16xf32>
    %90 = arith.truncf %89 : vector<16x16xf32> to vector<16x16xbf16>
    %cst_29 = arith.constant dense<0.000000e+00> : vector<16x16xf32>
    %91 = tpu.matmul %90, %76, %cst_29 {dimension_numbers = #tpu.dot_dimension_numbers<[1], [0], [0], [1], [0, 0, 1, 1], [], []>} : vector<16x16xbf16>, vector<16x16xbf16>, vector<16x16xf32> -> vector<16x16xf32>
    %92 = arith.truncf %91 : vector<16x16xf32> to vector<16x16xbf16>
    %93 = vector.extract_strided_slice %8 {offsets = [48, 0], sizes = [16, 64], strides = [1, 1]} : vector<64x64xbf16> to vector<16x64xbf16>
    %cst_30 = arith.constant dense<0.000000e+00> : vector<16x64xf32>
    %94 = tpu.matmul %92, %93, %cst_30 {dimension_numbers = #tpu.dot_dimension_numbers<[1], [0], [0], [1], [0, 0, 1, 1], [], []>} : vector<16x16xbf16>, vector<16x64xbf16>, vector<16x64xf32> -> vector<16x64xf32>
    %95 = arith.addf %73, %94 : vector<16x64xf32>
    %96 = vector.broadcast %7 : vector<1x64xf32> to vector<16x64xf32>
    %97 = arith.addf %95, %96 : vector<16x64xf32>
    %98 = arith.truncf %97 : vector<16x64xf32> to vector<16x64xbf16>
    %c0_31 = arith.constant 0 : index
    %c0_32 = arith.constant 0 : index
    %99 = vector.load %arg5[%c0_31, %c0_32] : memref<32x64xbf16, #tpu.memory_space<vmem>>, vector<16x64xbf16>
    tpu.vector_store %arg5[%c0_31, %c0_32], %98 {strides = array<i32>} : memref<32x64xbf16, #tpu.memory_space<vmem>>, vector<16x64xbf16>,
    %100 = vector.extract_strided_slice %3 {offsets = [16, 0], sizes = [16, 16], strides = [1, 1]} : vector<32x192xbf16> to vector<16x16xbf16>
    %101 = vector.extract_strided_slice %3 {offsets = [16, 64], sizes = [16, 16], strides = [1, 1]} : vector<32x192xbf16> to vector<16x16xbf16>
    %102 = vector.extract_strided_slice %3 {offsets = [16, 128], sizes = [16, 16], strides = [1, 1]} : vector<32x192xbf16> to vector<16x16xbf16>
    %cst_33 = arith.constant dense<0.000000e+00> : vector<16x16xf32>
    %103 = tpu.matmul %100, %101, %cst_33 {dimension_numbers = #tpu.dot_dimension_numbers<[1], [1], [0], [0], [0, 0, 1, 0], [], []>} : vector<16x16xbf16>, vector<16x16xbf16>, vector<16x16xf32> -> vector<16x16xf32>
    %cst_34 = arith.constant -1.000000e+30 : f32
    %104 = vector.broadcast %cst_34 : f32 to vector<16x16xf32>
    %105 = arith.select %6, %103, %104 : vector<16x16xi1>, vector<16x16xf32>
    %cst_35 = arith.constant dense<0xFF800000> : vector<16xf32>
    %106 = vector.multi_reduction <maximumf>, %105, %cst_35 [1] : vector<16x16xf32> to vector<16xf32>
    %107 = vector.shape_cast %106 : vector<16xf32> to vector<16x1xf32>
    %108 = vector.broadcast %107 : vector<16x1xf32> to vector<16x16xf32>
    %109 = arith.subf %105, %108 : vector<16x16xf32>
    %110 = math.exp %109 : vector<16x16xf32>
    %cst_36 = arith.constant dense<0.000000e+00> : vector<16xf32>
    %111 = vector.multi_reduction <add>, %110, %cst_36 [1] : vector<16x16xf32> to vector<16xf32>
    %112 = vector.shape_cast %111 : vector<16xf32> to vector<16x1xf32>
    %113 = tpu.reciprocal %112 {approx = true} : vector<16x1xf32> -> vector<16x1xf32>
    %114 = vector.broadcast %113 : vector<16x1xf32> to vector<16x16xf32>
    %115 = arith.mulf %110, %114 : vector<16x16xf32>
    %116 = arith.truncf %115 : vector<16x16xf32> to vector<16x16xbf16>
    %cst_37 = arith.constant dense<0.000000e+00> : vector<16x16xf32>
    %117 = tpu.matmul %116, %102, %cst_37 {dimension_numbers = #tpu.dot_dimension_numbers<[1], [0], [0], [1], [0, 0, 1, 1], [], []>} : vector<16x16xbf16>, vector<16x16xbf16>, vector<16x16xf32> -> vector<16x16xf32>
    %118 = arith.truncf %117 : vector<16x16xf32> to vector<16x16xbf16>
    %119 = vector.extract_strided_slice %8 {offsets = [0, 0], sizes = [16, 64], strides = [1, 1]} : vector<64x64xbf16> to vector<16x64xbf16>
    %cst_38 = arith.constant dense<0.000000e+00> : vector<16x64xf32>
    %120 = tpu.matmul %118, %119, %cst_38 {dimension_numbers = #tpu.dot_dimension_numbers<[1], [0], [0], [1], [0, 0, 1, 1], [], []>} : vector<16x16xbf16>, vector<16x64xbf16>, vector<16x64xf32> -> vector<16x64xf32>
    %121 = vector.extract_strided_slice %3 {offsets = [16, 16], sizes = [16, 16], strides = [1, 1]} : vector<32x192xbf16> to vector<16x16xbf16>
    %122 = vector.extract_strided_slice %3 {offsets = [16, 80], sizes = [16, 16], strides = [1, 1]} : vector<32x192xbf16> to vector<16x16xbf16>
    %123 = vector.extract_strided_slice %3 {offsets = [16, 144], sizes = [16, 16], strides = [1, 1]} : vector<32x192xbf16> to vector<16x16xbf16>
    %cst_39 = arith.constant dense<0.000000e+00> : vector<16x16xf32>
    %124 = tpu.matmul %121, %122, %cst_39 {dimension_numbers = #tpu.dot_dimension_numbers<[1], [1], [0], [0], [0, 0, 1, 0], [], []>} : vector<16x16xbf16>, vector<16x16xbf16>, vector<16x16xf32> -> vector<16x16xf32>
    %cst_40 = arith.constant -1.000000e+30 : f32
    %125 = vector.broadcast %cst_40 : f32 to vector<16x16xf32>
    %126 = arith.select %6, %124, %125 : vector<16x16xi1>, vector<16x16xf32>
    %cst_41 = arith.constant dense<0xFF800000> : vector<16xf32>
    %127 = vector.multi_reduction <maximumf>, %126, %cst_41 [1] : vector<16x16xf32> to vector<16xf32>
    %128 = vector.shape_cast %127 : vector<16xf32> to vector<16x1xf32>
    %129 = vector.broadcast %128 : vector<16x1xf32> to vector<16x16xf32>
    %130 = arith.subf %126, %129 : vector<16x16xf32>
    %131 = math.exp %130 : vector<16x16xf32>
    %cst_42 = arith.constant dense<0.000000e+00> : vector<16xf32>
    %132 = vector.multi_reduction <add>, %131, %cst_42 [1] : vector<16x16xf32> to vector<16xf32>
    %133 = vector.shape_cast %132 : vector<16xf32> to vector<16x1xf32>
    %134 = tpu.reciprocal %133 {approx = true} : vector<16x1xf32> -> vector<16x1xf32>
    %135 = vector.broadcast %134 : vector<16x1xf32> to vector<16x16xf32>
    %136 = arith.mulf %131, %135 : vector<16x16xf32>
    %137 = arith.truncf %136 : vector<16x16xf32> to vector<16x16xbf16>
    %cst_43 = arith.constant dense<0.000000e+00> : vector<16x16xf32>
    %138 = tpu.matmul %137, %123, %cst_43 {dimension_numbers = #tpu.dot_dimension_numbers<[1], [0], [0], [1], [0, 0, 1, 1], [], []>} : vector<16x16xbf16>, vector<16x16xbf16>, vector<16x16xf32> -> vector<16x16xf32>
    %139 = arith.truncf %138 : vector<16x16xf32> to vector<16x16xbf16>
    %140 = vector.extract_strided_slice %8 {offsets = [16, 0], sizes = [16, 64], strides = [1, 1]} : vector<64x64xbf16> to vector<16x64xbf16>
    %cst_44 = arith.constant dense<0.000000e+00> : vector<16x64xf32>
    %141 = tpu.matmul %139, %140, %cst_44 {dimension_numbers = #tpu.dot_dimension_numbers<[1], [0], [0], [1], [0, 0, 1, 1], [], []>} : vector<16x16xbf16>, vector<16x64xbf16>, vector<16x64xf32> -> vector<16x64xf32>
    %142 = arith.addf %120, %141 : vector<16x64xf32>
    %143 = vector.extract_strided_slice %3 {offsets = [16, 32], sizes = [16, 16], strides = [1, 1]} : vector<32x192xbf16> to vector<16x16xbf16>
    %144 = vector.extract_strided_slice %3 {offsets = [16, 96], sizes = [16, 16], strides = [1, 1]} : vector<32x192xbf16> to vector<16x16xbf16>
    %145 = vector.extract_strided_slice %3 {offsets = [16, 160], sizes = [16, 16], strides = [1, 1]} : vector<32x192xbf16> to vector<16x16xbf16>
    %cst_45 = arith.constant dense<0.000000e+00> : vector<16x16xf32>
    %146 = tpu.matmul %143, %144, %cst_45 {dimension_numbers = #tpu.dot_dimension_numbers<[1], [1], [0], [0], [0, 0, 1, 0], [], []>} : vector<16x16xbf16>, vector<16x16xbf16>, vector<16x16xf32> -> vector<16x16xf32>
    %cst_46 = arith.constant -1.000000e+30 : f32
    %147 = vector.broadcast %cst_46 : f32 to vector<16x16xf32>
    %148 = arith.select %6, %146, %147 : vector<16x16xi1>, vector<16x16xf32>
    %cst_47 = arith.constant dense<0xFF800000> : vector<16xf32>
    %149 = vector.multi_reduction <maximumf>, %148, %cst_47 [1] : vector<16x16xf32> to vector<16xf32>
    %150 = vector.shape_cast %149 : vector<16xf32> to vector<16x1xf32>
    %151 = vector.broadcast %150 : vector<16x1xf32> to vector<16x16xf32>
    %152 = arith.subf %148, %151 : vector<16x16xf32>
    %153 = math.exp %152 : vector<16x16xf32>
    %cst_48 = arith.constant dense<0.000000e+00> : vector<16xf32>
    %154 = vector.multi_reduction <add>, %153, %cst_48 [1] : vector<16x16xf32> to vector<16xf32>
    %155 = vector.shape_cast %154 : vector<16xf32> to vector<16x1xf32>
    %156 = tpu.reciprocal %155 {approx = true} : vector<16x1xf32> -> vector<16x1xf32>
    %157 = vector.broadcast %156 : vector<16x1xf32> to vector<16x16xf32>
    %158 = arith.mulf %153, %157 : vector<16x16xf32>
    %159 = arith.truncf %158 : vector<16x16xf32> to vector<16x16xbf16>
    %cst_49 = arith.constant dense<0.000000e+00> : vector<16x16xf32>
    %160 = tpu.matmul %159, %145, %cst_49 {dimension_numbers = #tpu.dot_dimension_numbers<[1], [0], [0], [1], [0, 0, 1, 1], [], []>} : vector<16x16xbf16>, vector<16x16xbf16>, vector<16x16xf32> -> vector<16x16xf32>
    %161 = arith.truncf %160 : vector<16x16xf32> to vector<16x16xbf16>
    %162 = vector.extract_strided_slice %8 {offsets = [32, 0], sizes = [16, 64], strides = [1, 1]} : vector<64x64xbf16> to vector<16x64xbf16>
    %cst_50 = arith.constant dense<0.000000e+00> : vector<16x64xf32>
    %163 = tpu.matmul %161, %162, %cst_50 {dimension_numbers = #tpu.dot_dimension_numbers<[1], [0], [0], [1], [0, 0, 1, 1], [], []>} : vector<16x16xbf16>, vector<16x64xbf16>, vector<16x64xf32> -> vector<16x64xf32>
    %164 = arith.addf %142, %163 : vector<16x64xf32>
    %165 = vector.extract_strided_slice %3 {offsets = [16, 48], sizes = [16, 16], strides = [1, 1]} : vector<32x192xbf16> to vector<16x16xbf16>
    %166 = vector.extract_strided_slice %3 {offsets = [16, 112], sizes = [16, 16], strides = [1, 1]} : vector<32x192xbf16> to vector<16x16xbf16>
    %167 = vector.extract_strided_slice %3 {offsets = [16, 176], sizes = [16, 16], strides = [1, 1]} : vector<32x192xbf16> to vector<16x16xbf16>
    %cst_51 = arith.constant dense<0.000000e+00> : vector<16x16xf32>
    %168 = tpu.matmul %165, %166, %cst_51 {dimension_numbers = #tpu.dot_dimension_numbers<[1], [1], [0], [0], [0, 0, 1, 0], [], []>} : vector<16x16xbf16>, vector<16x16xbf16>, vector<16x16xf32> -> vector<16x16xf32>
    %cst_52 = arith.constant -1.000000e+30 : f32
    %169 = vector.broadcast %cst_52 : f32 to vector<16x16xf32>
    %170 = arith.select %6, %168, %169 : vector<16x16xi1>, vector<16x16xf32>
    %cst_53 = arith.constant dense<0xFF800000> : vector<16xf32>
    %171 = vector.multi_reduction <maximumf>, %170, %cst_53 [1] : vector<16x16xf32> to vector<16xf32>
    %172 = vector.shape_cast %171 : vector<16xf32> to vector<16x1xf32>
    %173 = vector.broadcast %172 : vector<16x1xf32> to vector<16x16xf32>
    %174 = arith.subf %170, %173 : vector<16x16xf32>
    %175 = math.exp %174 : vector<16x16xf32>
    %cst_54 = arith.constant dense<0.000000e+00> : vector<16xf32>
    %176 = vector.multi_reduction <add>, %175, %cst_54 [1] : vector<16x16xf32> to vector<16xf32>
    %177 = vector.shape_cast %176 : vector<16xf32> to vector<16x1xf32>
    %178 = tpu.reciprocal %177 {approx = true} : vector<16x1xf32> -> vector<16x1xf32>
    %179 = vector.broadcast %178 : vector<16x1xf32> to vector<16x16xf32>
    %180 = arith.mulf %175, %179 : vector<16x16xf32>
    %181 = arith.truncf %180 : vector<16x16xf32> to vector<16x16xbf16>
    %cst_55 = arith.constant dense<0.000000e+00> : vector<16x16xf32>
    %182 = tpu.matmul %181, %167, %cst_55 {dimension_numbers = #tpu.dot_dimension_numbers<[1], [0], [0], [1], [0, 0, 1, 1], [], []>} : vector<16x16xbf16>, vector<16x16xbf16>, vector<16x16xf32> -> vector<16x16xf32>
    %183 = arith.truncf %182 : vector<16x16xf32> to vector<16x16xbf16>
    %184 = vector.extract_strided_slice %8 {offsets = [48, 0], sizes = [16, 64], strides = [1, 1]} : vector<64x64xbf16> to vector<16x64xbf16>
    %cst_56 = arith.constant dense<0.000000e+00> : vector<16x64xf32>
    %185 = tpu.matmul %183, %184, %cst_56 {dimension_numbers = #tpu.dot_dimension_numbers<[1], [0], [0], [1], [0, 0, 1, 1], [], []>} : vector<16x16xbf16>, vector<16x64xbf16>, vector<16x64xf32> -> vector<16x64xf32>
    %186 = arith.addf %164, %185 : vector<16x64xf32>
    %187 = vector.broadcast %7 : vector<1x64xf32> to vector<16x64xf32>
    %188 = arith.addf %186, %187 : vector<16x64xf32>
    %189 = arith.truncf %188 : vector<16x64xf32> to vector<16x64xbf16>
    %c16 = arith.constant 16 : index
    %c0_57 = arith.constant 0 : index
    %190 = vector.load %arg5[%c16, %c0_57] : memref<32x64xbf16, #tpu.memory_space<vmem>>, vector<16x64xbf16>
    tpu.vector_store %arg5[%c16, %c0_57], %189 {strides = array<i32>} : memref<32x64xbf16, #tpu.memory_space<vmem>>, vector<16x64xbf16>,
    return
  }
  func.func @transform_0(%arg0: i32) -> (i32, i32) {
    %c0_i32 = arith.constant 0 : i32
    %c0_i32_0 = arith.constant 0 : i32
    %c0_i32_1 = arith.constant 0 : i32
    return %c0_i32, %c0_i32_0 : i32, i32
  }
  func.func @transform_1(%arg0: i32) -> (i32, i32) {
    %c0_i32 = arith.constant 0 : i32
    %c0_i32_0 = arith.constant 0 : i32
    %c0_i32_1 = arith.constant 0 : i32
    return %c0_i32, %c0_i32_0 : i32, i32
  }
  func.func @transform_2(%arg0: i32) -> (i32, i32) {
    %c0_i32 = arith.constant 0 : i32
    %c0_i32_0 = arith.constant 0 : i32
    %c0_i32_1 = arith.constant 0 : i32
    return %c0_i32, %c0_i32_0 : i32, i32
  }
  func.func @transform_3(%arg0: i32) -> (i32, i32) {
    %c0_i32 = arith.constant 0 : i32
    %c0_i32_0 = arith.constant 0 : i32
    %c0_i32_1 = arith.constant 0 : i32
    return %c0_i32, %c0_i32_0 : i32, i32
  }
  func.func @transform_4(%arg0: i32) -> (i32, i32) {
    %c0_i32 = arith.constant 0 : i32
    %c0_i32_0 = arith.constant 0 : i32
    %c0_i32_1 = arith.constant 0 : i32
    return %c0_i32, %c0_i32_0 : i32, i32
  }
}

</mosaic_0001>

<llo_original>
// kernel: tpu_custom_call.1
$region0: #{tpu_custom_call.1}
  #allocation0 [shape = 'u32[]', space=smem, size = 0x4, offset = 0x4, fixed_abs, tag = 'smem constant byte address 0x4 - core index']
  #allocation1 [shape = 'u32[144,128]{1,0:T(1,128)}', space=vmem, size = 0x12000, scoped, tag = 'internal scratch']
  %s0 = inlined_call_operand.hbm [shape: bf16[32,64], index: 0, kind: input, shape index: {}]
  %s1 = inlined_call_operand.hbm [shape: bf16[64,192], index: 1, kind: input, shape index: {}]
  %s2 = inlined_call_operand.hbm [shape: bf16[64,64], index: 2, kind: input, shape index: {}]
  %s3 = inlined_call_operand.vmem [shape: f32[1,64], index: 3, kind: input, shape index: {}]
  %s4 = inlined_call_operand.hbm [shape: bf16[32,64], index: 4, kind: output, shape index: {}]
  %s5 = sld [smem:[#allocation0]]
  $region38: #{tpu_custom_call.1} parent=0
    _
  %s7 = ssub.s32 1, %s5
  %s8 = scalar_select 0, %s7, %s5
  $region1: #{tpu_custom_call.1} parent=0
    #allocation2 [shape = 'u8[8192]{0}', space=vmem, size = 0x2000, scoped, tag = 'input window, operand 0, single buffered']
    #allocation3 [shape = 's32[1]{0}', space=sflag, size = 0x4, scoped, tag = 'scoped memory for tpu_custom_call.1']
    #allocation4 [shape = 's32[1]{0}', space=sflag, size = 0x4, scoped, tag = 'scoped memory for tpu_custom_call.1']
    #allocation5 [shape = 'u8[32768]{0}', space=vmem, size = 0x8000, scoped, tag = 'input window, operand 1, single buffered']
    #allocation6 [shape = 's32[1]{0}', space=sflag, size = 0x4, scoped, tag = 'scoped memory for tpu_custom_call.1']
    #allocation7 [shape = 'u8[16384]{0}', space=vmem, size = 0x4000, scoped, tag = 'input window, operand 2, single buffered']
    #allocation8 [shape = 'u8[8192]{0}', space=vmem, size = 0x2000, scoped, tag = 'output window, operand 0, single buffered']
    %9 = vsyncpa [#allocation3], 0
    %10 = vsyncpa [#allocation6], 0
    %11 = vsyncpa [#allocation4], 0
    // Predicated region
    $region2: #{tpu_custom_call.1} parent=1 // pred_check
      _
    $region3: #{tpu_custom_call.1} parent=1 // pred_check_branch
      %13 = sbr.rel (0) target = $region5
    $region4: #{tpu_custom_call.1} parent=1 // pred_region
      %s15 = ssub.s32 256, 256
      %16 = vsyncadd [#allocation3], %s15
      %s17 = sshll.u32 [#allocation2], 4
      %s18 = int_to_ptr.vmem [resolvable:$true] %s17
      %23 = dma.hbm_to_vmem [thread:$0]  %s0, 256, %s18, [#allocation3], 64, 64, 4
    $region5: #{tpu_custom_call.1} parent=1 // pred_fallthru
      _
    // Predicated region
    $region6: #{tpu_custom_call.1} parent=1 // pred_check
      _
    $region7: #{tpu_custom_call.1} parent=1 // pred_check_branch
      %25 = sbr.rel (0) target = $region9
    $region8: #{tpu_custom_call.1} parent=1 // pred_region
      %s27 = ssub.s32 1024, 1024
      %28 = vsyncadd [#allocation6], %s27
      %s29 = sshll.u32 [#allocation5], 4
      %s30 = int_to_ptr.vmem [resolvable:$true] %s29
      %35 = dma.hbm_to_vmem [thread:$0]  %s1, 1024, %s30, [#allocation6], 128, 128, 8
    $region9: #{tpu_custom_call.1} parent=1 // pred_fallthru
      _
    // Predicated region
    $region10: #{tpu_custom_call.1} parent=1 // pred_check
      _
    $region11: #{tpu_custom_call.1} parent=1 // pred_check_branch
      %37 = sbr.rel (0) target = $region13
    $region12: #{tpu_custom_call.1} parent=1 // pred_region
      %s39 = ssub.s32 512, 512
      %40 = vsyncadd [#allocation6], %s39
      %s41 = sshll.u32 [#allocation7], 4
      %s42 = int_to_ptr.vmem [resolvable:$true] %s41
      %47 = dma.hbm_to_vmem [thread:$0]  %s2, 512, %s42, [#allocation6], 64, 64, 4
    $region13: #{tpu_custom_call.1} parent=1 // pred_fallthru
      _
    // Predicated region
    $region14: #{tpu_custom_call.1} parent=1 // pred_check
      _
    $region15: #{tpu_custom_call.1} parent=1 // pred_check_branch
      %49 = sbr.rel (0) target = $region17
    $region16: #{tpu_custom_call.1} parent=1 // pred_region
      _
    $region17: #{tpu_custom_call.1} parent=1 // pred_fallthru
      _
    // Predicated region
    $region18: #{tpu_custom_call.1} parent=1 // pred_check
      _
    $region19: #{tpu_custom_call.1} parent=1 // pred_check_branch
      %51 = sbr.rel (0) target = $region21
    $region20: #{tpu_custom_call.1} parent=1 // pred_region
      %52 = dma.done [#allocation3], 256
    $region21: #{tpu_custom_call.1} parent=1 // pred_fallthru
      _
    // Predicated region
    $region22: #{tpu_custom_call.1} parent=1 // pred_check
      _
    $region23: #{tpu_custom_call.1} parent=1 // pred_check_branch
      %54 = sbr.rel (0) target = $region25
    $region24: #{tpu_custom_call.1} parent=1 // pred_region
      %55 = dma.done [#allocation6], 1024
    $region25: #{tpu_custom_call.1} parent=1 // pred_fallthru
      _
    // Predicated region
    $region26: #{tpu_custom_call.1} parent=1 // pred_check
      _
    $region27: #{tpu_custom_call.1} parent=1 // pred_check_branch
      %57 = sbr.rel (0) target = $region29
    $region28: #{tpu_custom_call.1} parent=1 // pred_region
      %58 = dma.done [#allocation6], 512
    $region29: #{tpu_custom_call.1} parent=1 // pred_fallthru
      _
    %v60 = vld [vmem:[#allocation2] sm:$0xf]
    %v61 = vld [vmem:[#allocation2 + $0x4] sm:$0xf]
    %v62 = vld [vmem:[#allocation2 + $0x8] sm:$0xf]
    %v63 = vld [vmem:[#allocation2 + $0xc] sm:$0xf]
    %v64 = vld [vmem:[#allocation5] sm:$0xff]
    %v65 = vld [vmem:[#allocation5 + $0x8] sm:$0xff]
    %v66 = vld [vmem:[#allocation5 + $0x10] sm:$0xff]
    %v67 = vld [vmem:[#allocation5 + $0x18] sm:$0xff]
    %v68 = vld [vmem:[#allocation5 + $0x20] sm:$0xff]
    %v69 = vld [vmem:[#allocation5 + $0x28] sm:$0xff]
    %v70 = vld [vmem:[#allocation5 + $0x30] sm:$0xff]
    %v71 = vld [vmem:[#allocation5 + $0x38] sm:$0xff]
    %v76 = vunpack.c.l.b16 %v60
    %v77 = vunpack.c.l.b16 %v61
    %v78 = vunpack.c.l.b16 %v62
    %v79 = vunpack.c.l.b16 %v63
    %v80 = vpack.c.b16 %v77, %v76
    %v81 = vpack.c.b16 %v79, %v78
    %v90 = vunpack.c.l.b16 %v64
    %v91 = vunpack.c.h.b16 %v64
    %v92 = vunpack.c.l.b16 %v65
    %v93 = vunpack.c.h.b16 %v65
    %v94 = vunpack.c.l.b16 %v66
    %v95 = vunpack.c.h.b16 %v66
    %v96 = vunpack.c.l.b16 %v67
    %v97 = vunpack.c.h.b16 %v67
    %v98 = vunpack.c.l.b16 %v68
    %v99 = vunpack.c.h.b16 %v68
    %v100 = vunpack.c.l.b16 %v69
    %v101 = vunpack.c.h.b16 %v69
    %v102 = vunpack.c.l.b16 %v70
    %v103 = vunpack.c.h.b16 %v70
    %v104 = vunpack.c.l.b16 %v71
    %v105 = vunpack.c.h.b16 %v71
    %v106 = vpack.c.b16 %v92, %v90
    %v107 = vpack.c.b16 %v93, %v91
    %v108 = vpack.c.b16 %v96, %v94
    %v109 = vpack.c.b16 %v97, %v95
    %v110 = vpack.c.b16 %v100, %v98
    %v111 = vpack.c.b16 %v101, %v99
    %v112 = vpack.c.b16 %v104, %v102
    %v113 = vpack.c.b16 %v105, %v103
    %vm122 = vcmask 523264
    %v124 = vsel %vm122, %v80, 0
    %v127 = vsel %vm122, %v81, 0
    %129 = vmatprep.subr.bf16.mxu0 %v107
    %130 = vmatpush1.bf16.msra.mxu0 %v106
    %131 = vmatprep.subr.bf16.mxu0 %v109
    %132 = vmatpush1.bf16.msra.mxu0 %v108
    %133 = vmatprep.subr.bf16.mxu0 %v111
    %134 = vmatpush1.bf16.msra.mxu0 %v110
    %135 = vmatprep.subr.bf16.mxu0 %v113
    %136 = vmatpush1.bf16.msra.mxu0 %v112
    %137 = vmatprep.subr.bf16.mxu0 0
    %138 = vmatpush1.bf16.msra.mxu0 0
    %139 = vmatprep.subr.bf16.mxu0 0
    %140 = vmatpush1.bf16.msra.mxu0 0
    %141 = vmatprep.subr.bf16.mxu0 0
    %142 = vmatpush1.bf16.msra.mxu0 0
    %143 = vmatprep.subr.bf16.mxu0 0
    %144 = vmatpush1.bf16.msra.mxu0 0
    %145 = vmatprep.subr.bf16.mxu0 0
    %146 = vmatpush1.bf16.msra.mxu0 0
    %147 = vmatprep.subr.bf16.mxu0 0
    %148 = vmatpush1.bf16.msra.mxu0 0
    %149 = vmatprep.subr.bf16.mxu0 0
    %150 = vmatpush1.bf16.msra.mxu0 0
    %151 = vmatprep.subr.bf16.mxu0 0
    %152 = vmatpush1.bf16.msra.mxu0 0
    %153 = vmatprep.subr.bf16.mxu0 0
    %154 = vmatpush1.bf16.msra.mxu0 0
    %155 = vmatprep.subr.bf16.mxu0 0
    %156 = vmatpush1.bf16.msra.mxu0 0
    %157 = vmatprep.subr.bf16.mxu0 0
    %158 = vmatpush1.bf16.msra.mxu0 0
    %159 = vmatprep.subr.bf16.mxu0 0
    %160 = vmatpush1.bf16.msra.mxu0 0
    %161 = vmatprep.mubr.bf16.mxu0 0
    %162 = vmatmul.mubr.bf16.gmra.mrb[0].mxu0 %v124
    %v163 = vpop.f32.mrb[0].mxu0
    %v164 = vadd.f32 0.0, %v163
    %v165 = vpop.f32.mrb[0].mxu0
    %v166 = vadd.f32 0.0, %v165
    %v167 = vpop.f32.mrb[0].mxu0
    %v168 = vadd.f32 0.0, %v167
    %v169 = vpop.f32.mrb[0].mxu0
    %v170 = vadd.f32 0.0, %v169
    %171 = vmatprep.mubr.bf16.mxu0 0
    %172 = vmatmul.mubr.bf16.gmra.mrb[0].mxu0 %v127
    %v173 = vpop.f32.mrb[0].mxu0
    %v174 = vadd.f32 0.0, %v173
    %v175 = vpop.f32.mrb[0].mxu0
    %v176 = vadd.f32 0.0, %v175
    %v177 = vpop.f32.mrb[0].mxu0
    %v178 = vadd.f32 0.0, %v177
    %v179 = vpop.f32.mrb[0].mxu0
    %v180 = vadd.f32 0.0, %v179
    %181 = vdwg.mxu0
    %v182 = vpack.c.bf16 %v168, %v164
    %v183 = vpack.c.bf16 %v170, %v166
    %v184 = vpack.c.bf16 %v178, %v174
    %v185 = vpack.c.bf16 %v180, %v176
    %v186 = vlaneseq
    %v187 = vshrl.u32 %v186, 7
    %v188 = vadd.s32 %v187, 8
    %v189 = vlaneseq
    %v190 = vand.u32 %v189, 127
    %vm191 = vcmp.le.s32.totalorder %v190, %v187
    %vm192 = vcmp.le.s32.totalorder %v190, %v188
    %v193 = vld [vmem:[%s3] sm:$0x1]
    %v194 = vld [vmem:[#allocation7] sm:$0xf]
    %v195 = vld [vmem:[#allocation7 + $0x4] sm:$0xf]
    %v196 = vld [vmem:[#allocation7 + $0x8] sm:$0xf]
    %v197 = vld [vmem:[#allocation7 + $0xc] sm:$0xf]
    %v198 = vld [vmem:[#allocation7 + $0x10] sm:$0xf]
    %v199 = vld [vmem:[#allocation7 + $0x14] sm:$0xf]
    %v200 = vld [vmem:[#allocation7 + $0x18] sm:$0xf]
    %v201 = vld [vmem:[#allocation7 + $0x1c] sm:$0xf]
    %203 = vrot.lane.b32.xlu0 %v182, 64
    %v204 = vpop.permute.xlu0 %203
    %vm205 = vcmask 130048
    %v207 = vsel %vm205, %v182, 0
    %v210 = vsel %vm205, %v204, 0
    %212 = vmatprep.subr.bf16.mxu0 0
    %213 = vmatpush1.bf16.xpose.msra.mxu0 %v210
    %214 = vmatprep.subr.bf16.mxu0 0
    %215 = vmatpush1.bf16.xpose.msra.mxu0 0
    %216 = vmatprep.subr.bf16.mxu0 0
    %217 = vmatpush1.bf16.xpose.msra.mxu0 0
    %218 = vmatprep.subr.bf16.mxu0 0
    %219 = vmatpush1.bf16.xpose.msra.mxu0 0
    %220 = vmatprep.subr.bf16.mxu0 0
    %221 = vmatpush1.bf16.xpose.msra.mxu0 0
    %222 = vmatprep.subr.bf16.mxu0 0
    %223 = vmatpush1.bf16.xpose.msra.mxu0 0
    %224 = vmatprep.subr.bf16.mxu0 0
    %225 = vmatpush1.bf16.xpose.msra.mxu0 0
    %226 = vmatprep.subr.bf16.mxu0 0
    %227 = vmatpush1.bf16.xpose.msra.mxu0 0
    %228 = vmatprep.subr.bf16.mxu0 0
    %229 = vmatpush1.bf16.xpose.msra.mxu0 0
    %230 = vmatprep.subr.bf16.mxu0 0
    %231 = vmatpush1.bf16.xpose.msra.mxu0 0
    %232 = vmatprep.subr.bf16.mxu0 0
    %233 = vmatpush1.bf16.xpose.msra.mxu0 0
    %234 = vmatprep.subr.bf16.mxu0 0
    %235 = vmatpush1.bf16.xpose.msra.mxu0 0
    %236 = vmatprep.subr.bf16.mxu0 0
    %237 = vmatpush1.bf16.xpose.msra.mxu0 0
    %238 = vmatprep.subr.bf16.mxu0 0
    %239 = vmatpush1.bf16.xpose.msra.mxu0 0
    %240 = vmatprep.subr.bf16.mxu0 0
    %241 = vmatpush1.bf16.xpose.msra.mxu0 0
    %242 = vmatprep.subr.bf16.mxu0 0
    %243 = vmatpush1.bf16.xpose.msra.mxu0 0
    %244 = vmatprep.mubr.bf16.mxu0 0
    %245 = vmatmul.mubr.bf16.gmra.mrb[0].mxu0 %v207
    %v246 = vpop.f32.mrb[0].mxu0
    %v247 = vadd.f32 0.0, %v246
    %v248 = vpop.f32.mrb[0].mxu0
    %v249 = vpop.f32.mrb[0].mxu0
    %v250 = vadd.f32 0.0, %v249
    %v251 = vpop.f32.mrb[0].mxu0
    %252 = vdwg.mxu0
    %v253 = vsel %vm191, %v247, -1e+30
    %v254 = vsel %vm192, %v250, -1e+30
    %v255 = vsel %vm205, %v253, -inf
    %256 = vmax.xlane.f32.xlu0 %v255
    %v257 = vpop.xlane.xlu0 %256
    %v258 = vsel %vm205, %v254, -inf
    %259 = vmax.xlane.f32.xlu0 %v258
    %v260 = vpop.xlane.xlu0 %259
    %v261 = vsub.f32 %v253, %v257
    %v262 = vsub.f32 %v254, %v260
    %v263 = vmul.f32 %v261, 1.442695
    %v264 = vpow.pop %v263
    %v265 = vmul.f32 %v262, 1.442695
    %v266 = vpow.pop %v265
    %v267 = vsel %vm205, %v264, 0.0
    %268 = vadd.xlane.f32.xlu0 %v267
    %v269 = vpop.xlane.xlu0 %268
    %v270 = vsel %vm205, %v266, 0.0
    %271 = vadd.xlane.f32.xlu0 %v270
    %v272 = vpop.xlane.xlu0 %271
    %v273 = vrcp.pop %v269
    %v274 = vrcp.pop %v272
    %v275 = vmul.f32 %v264, %v273
    %v276 = vmul.f32 %v266, %v274
    %v277 = vpack.c.bf16 %v276, %v275
    %v279 = vsel %vm205, %v277, 0
    %281 = vmatprep.subr.bf16.mxu0 0
    %282 = vmatpush1.bf16.msra.mxu0 %v183
    %283 = vmatprep.subr.bf16.mxu0 0
    %284 = vmatpush1.bf16.msra.mxu0 0
    %285 = vmatprep.subr.bf16.mxu0 0
    %286 = vmatpush1.bf16.msra.mxu0 0
    %287 = vmatprep.subr.bf16.mxu0 0
    %288 = vmatpush1.bf16.msra.mxu0 0
    %289 = vmatprep.subr.bf16.mxu0 0
    %290 = vmatpush1.bf16.msra.mxu0 0
    %291 = vmatprep.subr.bf16.mxu0 0
    %292 = vmatpush1.bf16.msra.mxu0 0
    %293 = vmatprep.subr.bf16.mxu0 0
    %294 = vmatpush1.bf16.msra.mxu0 0
    %295 = vmatprep.subr.bf16.mxu0 0
    %296 = vmatpush1.bf16.msra.mxu0 0
    %297 = vmatprep.subr.bf16.mxu0 0
    %298 = vmatpush1.bf16.msra.mxu0 0
    %299 = vmatprep.subr.bf16.mxu0 0
    %300 = vmatpush1.bf16.msra.mxu0 0
    %301 = vmatprep.subr.bf16.mxu0 0
    %302 = vmatpush1.bf16.msra.mxu0 0
    %303 = vmatprep.subr.bf16.mxu0 0
    %304 = vmatpush1.bf16.msra.mxu0 0
    %305 = vmatprep.subr.bf16.mxu0 0
    %306 = vmatpush1.bf16.msra.mxu0 0
    %307 = vmatprep.subr.bf16.mxu0 0
    %308 = vmatpush1.bf16.msra.mxu0 0
    %309 = vmatprep.subr.bf16.mxu0 0
    %310 = vmatpush1.bf16.msra.mxu0 0
    %311 = vmatprep.subr.bf16.mxu0 0
    %312 = vmatpush1.bf16.msra.mxu0 0
    %313 = vmatprep.mubr.bf16.mxu0 0
    %314 = vmatmul.mubr.bf16.gmra.mrb[0].mxu0 %v279
    %v315 = vpop.f32.mrb[0].mxu0
    %v316 = vadd.f32 0.0, %v315
    %v317 = vpop.f32.mrb[0].mxu0
    %v318 = vpop.f32.mrb[0].mxu0
    %v319 = vadd.f32 0.0, %v318
    %v320 = vpop.f32.mrb[0].mxu0
    %321 = vdwg.mxu0
    %v322 = vpack.c.bf16 %v319, %v316
    %323 = vrot.lane.b32.xlu0 %v182, 112
    %v324 = vpop.permute.xlu0 %323
    %325 = vrot.lane.b32.xlu0 %v182, 48
    %v326 = vpop.permute.xlu0 %325
    %v328 = vsel %vm205, %v324, 0
    %v331 = vsel %vm205, %v326, 0
    %333 = vmatprep.subr.bf16.mxu0 0
    %334 = vmatpush1.bf16.xpose.msra.mxu0 %v331
    %335 = vmatprep.subr.bf16.mxu0 0
    %336 = vmatpush1.bf16.xpose.msra.mxu0 0
    %337 = vmatprep.subr.bf16.mxu0 0
    %338 = vmatpush1.bf16.xpose.msra.mxu0 0
    %339 = vmatprep.subr.bf16.mxu0 0
    %340 = vmatpush1.bf16.xpose.msra.mxu0 0
    %341 = vmatprep.subr.bf16.mxu0 0
    %342 = vmatpush1.bf16.xpose.msra.mxu0 0
    %343 = vmatprep.subr.bf16.mxu0 0
    %344 = vmatpush1.bf16.xpose.msra.mxu0 0
    %345 = vmatprep.subr.bf16.mxu0 0
    %346 = vmatpush1.bf16.xpose.msra.mxu0 0
    %347 = vmatprep.subr.bf16.mxu0 0
    %348 = vmatpush1.bf16.xpose.msra.mxu0 0
    %349 = vmatprep.subr.bf16.mxu0 0
    %350 = vmatpush1.bf16.xpose.msra.mxu0 0
    %351 = vmatprep.subr.bf16.mxu0 0
    %352 = vmatpush1.bf16.xpose.msra.mxu0 0
    %353 = vmatprep.subr.bf16.mxu0 0
    %354 = vmatpush1.bf16.xpose.msra.mxu0 0
    %355 = vmatprep.subr.bf16.mxu0 0
    %356 = vmatpush1.bf16.xpose.msra.mxu0 0
    %357 = vmatprep.subr.bf16.mxu0 0
    %358 = vmatpush1.bf16.xpose.msra.mxu0 0
    %359 = vmatprep.subr.bf16.mxu0 0
    %360 = vmatpush1.bf16.xpose.msra.mxu0 0
    %361 = vmatprep.subr.bf16.mxu0 0
    %362 = vmatpush1.bf16.xpose.msra.mxu0 0
    %363 = vmatprep.subr.bf16.mxu0 0
    %364 = vmatpush1.bf16.xpose.msra.mxu0 0
    %365 = vmatprep.mubr.bf16.mxu0 0
    %366 = vmatmul.mubr.bf16.gmra.mrb[0].mxu0 %v328
    %v367 = vpop.f32.mrb[0].mxu0
    %v368 = vadd.f32 0.0, %v367
    %v369 = vpop.f32.mrb[0].mxu0
    %v370 = vpop.f32.mrb[0].mxu0
    %v371 = vadd.f32 0.0, %v370
    %v372 = vpop.f32.mrb[0].mxu0
    %373 = vdwg.mxu0
    %v374 = vsel %vm191, %v368, -1e+30
    %v375 = vsel %vm192, %v371, -1e+30
    %v376 = vsel %vm205, %v374, -inf
    %377 = vmax.xlane.f32.xlu0 %v376
    %v378 = vpop.xlane.xlu0 %377
    %v379 = vsel %vm205, %v375, -inf
    %380 = vmax.xlane.f32.xlu0 %v379
    %v381 = vpop.xlane.xlu0 %380
    %v382 = vsub.f32 %v374, %v378
    %v383 = vsub.f32 %v375, %v381
    %v384 = vmul.f32 %v382, 1.442695
    %v385 = vpow.pop %v384
    %v386 = vmul.f32 %v383, 1.442695
    %v387 = vpow.pop %v386
    %v388 = vsel %vm205, %v385, 0.0
    %389 = vadd.xlane.f32.xlu0 %v388
    %v390 = vpop.xlane.xlu0 %389
    %v391 = vsel %vm205, %v387, 0.0
    %392 = vadd.xlane.f32.xlu0 %v391
    %v393 = vpop.xlane.xlu0 %392
    %v394 = vrcp.pop %v390
    %v395 = vrcp.pop %v393
    %v396 = vmul.f32 %v385, %v394
    %v397 = vmul.f32 %v387, %v395
    %v398 = vpack.c.bf16 %v397, %v396
    %400 = vrot.lane.b32.xlu0 %v183, 112
    %v401 = vpop.permute.xlu0 %400
    %v404 = vsel %vm205, %v398, 0
    %406 = vmatprep.subr.bf16.mxu0 0
    %407 = vmatpush1.bf16.msra.mxu0 %v401
    %408 = vmatprep.subr.bf16.mxu0 0
    %409 = vmatpush1.bf16.msra.mxu0 0
    %410 = vmatprep.subr.bf16.mxu0 0
    %411 = vmatpush1.bf16.msra.mxu0 0
    %412 = vmatprep.subr.bf16.mxu0 0
    %413 = vmatpush1.bf16.msra.mxu0 0
    %414 = vmatprep.subr.bf16.mxu0 0
    %415 = vmatpush1.bf16.msra.mxu0 0
    %416 = vmatprep.subr.bf16.mxu0 0
    %417 = vmatpush1.bf16.msra.mxu0 0
    %418 = vmatprep.subr.bf16.mxu0 0
    %419 = vmatpush1.bf16.msra.mxu0 0
    %420 = vmatprep.subr.bf16.mxu0 0
    %421 = vmatpush1.bf16.msra.mxu0 0
    %422 = vmatprep.subr.bf16.mxu0 0
    %423 = vmatpush1.bf16.msra.mxu0 0
    %424 = vmatprep.subr.bf16.mxu0 0
    %425 = vmatpush1.bf16.msra.mxu0 0
    %426 = vmatprep.subr.bf16.mxu0 0
    %427 = vmatpush1.bf16.msra.mxu0 0
    %428 = vmatprep.subr.bf16.mxu0 0
    %429 = vmatpush1.bf16.msra.mxu0 0
    %430 = vmatprep.subr.bf16.mxu0 0
    %431 = vmatpush1.bf16.msra.mxu0 0
    %432 = vmatprep.subr.bf16.mxu0 0
    %433 = vmatpush1.bf16.msra.mxu0 0
    %434 = vmatprep.subr.bf16.mxu0 0
    %435 = vmatpush1.bf16.msra.mxu0 0
    %436 = vmatprep.subr.bf16.mxu0 0
    %437 = vmatpush1.bf16.msra.mxu0 0
    %438 = vmatprep.mubr.bf16.mxu0 0
    %439 = vmatmul.mubr.bf16.gmra.mrb[0].mxu0 %v404
    %v440 = vpop.f32.mrb[0].mxu0
    %v441 = vadd.f32 0.0, %v440
    %v442 = vpop.f32.mrb[0].mxu0
    %v443 = vpop.f32.mrb[0].mxu0
    %v444 = vadd.f32 0.0, %v443
    %v445 = vpop.f32.mrb[0].mxu0
    %446 = vdwg.mxu0
    %v447 = vpack.c.bf16 %v444, %v441
    %v450 = vunpack.c.l.b16 %v196
    %v451 = vunpack.c.l.b16 %v197
    %v452 = vpack.c.b16 %v451, %v450
    %v455 = vsel %vm205, %v447, 0
    %457 = vmatprep.subr.bf16.mxu0 0
    %458 = vmatpush1.bf16.msra.mxu0 %v452
    %459 = vmatprep.subr.bf16.mxu0 0
    %460 = vmatpush1.bf16.msra.mxu0 0
    %461 = vmatprep.subr.bf16.mxu0 0
    %462 = vmatpush1.bf16.msra.mxu0 0
    %463 = vmatprep.subr.bf16.mxu0 0
    %464 = vmatpush1.bf16.msra.mxu0 0
    %465 = vmatprep.subr.bf16.mxu0 0
    %466 = vmatpush1.bf16.msra.mxu0 0
    %467 = vmatprep.subr.bf16.mxu0 0
    %468 = vmatpush1.bf16.msra.mxu0 0
    %469 = vmatprep.subr.bf16.mxu0 0
    %470 = vmatpush1.bf16.msra.mxu0 0
    %471 = vmatprep.subr.bf16.mxu0 0
    %472 = vmatpush1.bf16.msra.mxu0 0
    %473 = vmatprep.subr.bf16.mxu0 0
    %474 = vmatpush1.bf16.msra.mxu0 0
    %475 = vmatprep.subr.bf16.mxu0 0
    %476 = vmatpush1.bf16.msra.mxu0 0
    %477 = vmatprep.subr.bf16.mxu0 0
    %478 = vmatpush1.bf16.msra.mxu0 0
    %479 = vmatprep.subr.bf16.mxu0 0
    %480 = vmatpush1.bf16.msra.mxu0 0
    %481 = vmatprep.subr.bf16.mxu0 0
    %482 = vmatpush1.bf16.msra.mxu0 0
    %483 = vmatprep.subr.bf16.mxu0 0
    %484 = vmatpush1.bf16.msra.mxu0 0
    %485 = vmatprep.subr.bf16.mxu0 0
    %486 = vmatpush1.bf16.msra.mxu0 0
    %487 = vmatprep.subr.bf16.mxu0 0
    %488 = vmatpush1.bf16.msra.mxu0 0
    %489 = vmatprep.mubr.bf16.mxu0 0
    %490 = vmatmul.mubr.bf16.gmra.mrb[0].mxu0 %v455
    %v491 = vpop.f32.mrb[0].mxu0
    %v492 = vadd.f32 0.0, %v491
    %v493 = vpop.f32.mrb[0].mxu0
    %v494 = vpop.f32.mrb[0].mxu0
    %v495 = vadd.f32 0.0, %v494
    %v496 = vpop.f32.mrb[0].mxu0
    %497 = vdwg.mxu0
    %v500 = vunpack.c.l.b16 %v194
    %v501 = vunpack.c.l.b16 %v195
    %v502 = vpack.c.b16 %v501, %v500
    %v505 = vsel %vm205, %v322, 0
    %507 = vmatprep.subr.bf16.mxu0 0
    %508 = vmatpush1.bf16.msra.mxu0 %v502
    %509 = vmatprep.subr.bf16.mxu0 0
    %510 = vmatpush1.bf16.msra.mxu0 0
    %511 = vmatprep.subr.bf16.mxu0 0
    %512 = vmatpush1.bf16.msra.mxu0 0
    %513 = vmatprep.subr.bf16.mxu0 0
    %514 = vmatpush1.bf16.msra.mxu0 0
    %515 = vmatprep.subr.bf16.mxu0 0
    %516 = vmatpush1.bf16.msra.mxu0 0
    %517 = vmatprep.subr.bf16.mxu0 0
    %518 = vmatpush1.bf16.msra.mxu0 0
    %519 = vmatprep.subr.bf16.mxu0 0
    %520 = vmatpush1.bf16.msra.mxu0 0
    %521 = vmatprep.subr.bf16.mxu0 0
    %522 = vmatpush1.bf16.msra.mxu0 0
    %523 = vmatprep.subr.bf16.mxu0 0
    %524 = vmatpush1.bf16.msra.mxu0 0
    %525 = vmatprep.subr.bf16.mxu0 0
    %526 = vmatpush1.bf16.msra.mxu0 0
    %527 = vmatprep.subr.bf16.mxu0 0
    %528 = vmatpush1.bf16.msra.mxu0 0
    %529 = vmatprep.subr.bf16.mxu0 0
    %530 = vmatpush1.bf16.msra.mxu0 0
    %531 = vmatprep.subr.bf16.mxu0 0
    %532 = vmatpush1.bf16.msra.mxu0 0
    %533 = vmatprep.subr.bf16.mxu0 0
    %534 = vmatpush1.bf16.msra.mxu0 0
    %535 = vmatprep.subr.bf16.mxu0 0
    %536 = vmatpush1.bf16.msra.mxu0 0
    %537 = vmatprep.subr.bf16.mxu0 0
    %538 = vmatpush1.bf16.msra.mxu0 0
    %539 = vmatprep.mubr.bf16.mxu0 0
    %540 = vmatmul.mubr.bf16.gmra.mrb[0].mxu0 %v505
    %v541 = vpop.f32.mrb[0].mxu0
    %v542 = vadd.f32 %v492, %v541
    %v543 = vpop.f32.mrb[0].mxu0
    %v544 = vpop.f32.mrb[0].mxu0
    %v545 = vadd.f32 %v495, %v544
    %v546 = vpop.f32.mrb[0].mxu0
    %547 = vdwg.mxu0
    %548 = vrot.lane.b32.xlu0 %v182, 96
    %v549 = vpop.permute.xlu0 %548
    %550 = vrot.lane.b32.xlu0 %v182, 32
    %v551 = vpop.permute.xlu0 %550
    %v553 = vsel %vm205, %v549, 0
    %v556 = vsel %vm205, %v551, 0
    %558 = vmatprep.subr.bf16.mxu0 0
    %559 = vmatpush1.bf16.xpose.msra.mxu0 %v556
    %560 = vmatprep.subr.bf16.mxu0 0
    %561 = vmatpush1.bf16.xpose.msra.mxu0 0
    %562 = vmatprep.subr.bf16.mxu0 0
    %563 = vmatpush1.bf16.xpose.msra.mxu0 0
    %564 = vmatprep.subr.bf16.mxu0 0
    %565 = vmatpush1.bf16.xpose.msra.mxu0 0
    %566 = vmatprep.subr.bf16.mxu0 0
    %567 = vmatpush1.bf16.xpose.msra.mxu0 0
    %568 = vmatprep.subr.bf16.mxu0 0
    %569 = vmatpush1.bf16.xpose.msra.mxu0 0
    %570 = vmatprep.subr.bf16.mxu0 0
    %571 = vmatpush1.bf16.xpose.msra.mxu0 0
    %572 = vmatprep.subr.bf16.mxu0 0
    %573 = vmatpush1.bf16.xpose.msra.mxu0 0
    %574 = vmatprep.subr.bf16.mxu0 0
    %575 = vmatpush1.bf16.xpose.msra.mxu0 0
    %576 = vmatprep.subr.bf16.mxu0 0
    %577 = vmatpush1.bf16.xpose.msra.mxu0 0
    %578 = vmatprep.subr.bf16.mxu0 0
    %579 = vmatpush1.bf16.xpose.msra.mxu0 0
    %580 = vmatprep.subr.bf16.mxu0 0
    %581 = vmatpush1.bf16.xpose.msra.mxu0 0
    %582 = vmatprep.subr.bf16.mxu0 0
    %583 = vmatpush1.bf16.xpose.msra.mxu0 0
    %584 = vmatprep.subr.bf16.mxu0 0
    %585 = vmatpush1.bf16.xpose.msra.mxu0 0
    %586 = vmatprep.subr.bf16.mxu0 0
    %587 = vmatpush1.bf16.xpose.msra.mxu0 0
    %588 = vmatprep.subr.bf16.mxu0 0
    %589 = vmatpush1.bf16.xpose.msra.mxu0 0
    %590 = vmatprep.mubr.bf16.mxu0 0
    %591 = vmatmul.mubr.bf16.gmra.mrb[0].mxu0 %v553
    %v592 = vpop.f32.mrb[0].mxu0
    %v593 = vadd.f32 0.0, %v592
    %v594 = vpop.f32.mrb[0].mxu0
    %v595 = vpop.f32.mrb[0].mxu0
    %v596 = vadd.f32 0.0, %v595
    %v597 = vpop.f32.mrb[0].mxu0
    %598 = vdwg.mxu0
    %v599 = vsel %vm191, %v593, -1e+30
    %v600 = vsel %vm192, %v596, -1e+30
    %v601 = vsel %vm205, %v599, -inf
    %602 = vmax.xlane.f32.xlu0 %v601
    %v603 = vpop.xlane.xlu0 %602
    %v604 = vsel %vm205, %v600, -inf
    %605 = vmax.xlane.f32.xlu0 %v604
    %v606 = vpop.xlane.xlu0 %605
    %v607 = vsub.f32 %v599, %v603
    %v608 = vsub.f32 %v600, %v606
    %v609 = vmul.f32 %v607, 1.442695
    %v610 = vpow.pop %v609
    %v611 = vmul.f32 %v608, 1.442695
    %v612 = vpow.pop %v611
    %v613 = vsel %vm205, %v610, 0.0
    %614 = vadd.xlane.f32.xlu0 %v613
    %v615 = vpop.xlane.xlu0 %614
    %v616 = vsel %vm205, %v612, 0.0
    %617 = vadd.xlane.f32.xlu0 %v616
    %v618 = vpop.xlane.xlu0 %617
    %v619 = vrcp.pop %v615
    %v620 = vrcp.pop %v618
    %v621 = vmul.f32 %v610, %v619
    %v622 = vmul.f32 %v612, %v620
    %v623 = vpack.c.bf16 %v622, %v621
    %624 = vrot.lane.b32.xlu0 %v183, 96
    %v625 = vpop.permute.xlu0 %624
    %v628 = vsel %vm205, %v623, 0
    %630 = vmatprep.subr.bf16.mxu0 0
    %631 = vmatpush1.bf16.msra.mxu0 %v625
    %632 = vmatprep.subr.bf16.mxu0 0
    %633 = vmatpush1.bf16.msra.mxu0 0
    %634 = vmatprep.subr.bf16.mxu0 0
    %635 = vmatpush1.bf16.msra.mxu0 0
    %636 = vmatprep.subr.bf16.mxu0 0
    %637 = vmatpush1.bf16.msra.mxu0 0
    %638 = vmatprep.subr.bf16.mxu0 0
    %639 = vmatpush1.bf16.msra.mxu0 0
    %640 = vmatprep.subr.bf16.mxu0 0
    %641 = vmatpush1.bf16.msra.mxu0 0
    %642 = vmatprep.subr.bf16.mxu0 0
    %643 = vmatpush1.bf16.msra.mxu0 0
    %644 = vmatprep.subr.bf16.mxu0 0
    %645 = vmatpush1.bf16.msra.mxu0 0
    %646 = vmatprep.subr.bf16.mxu0 0
    %647 = vmatpush1.bf16.msra.mxu0 0
    %648 = vmatprep.subr.bf16.mxu0 0
    %649 = vmatpush1.bf16.msra.mxu0 0
    %650 = vmatprep.subr.bf16.mxu0 0
    %651 = vmatpush1.bf16.msra.mxu0 0
    %652 = vmatprep.subr.bf16.mxu0 0
    %653 = vmatpush1.bf16.msra.mxu0 0
    %654 = vmatprep.subr.bf16.mxu0 0
    %655 = vmatpush1.bf16.msra.mxu0 0
    %656 = vmatprep.subr.bf16.mxu0 0
    %657 = vmatpush1.bf16.msra.mxu0 0
    %658 = vmatprep.subr.bf16.mxu0 0
    %659 = vmatpush1.bf16.msra.mxu0 0
    %660 = vmatprep.subr.bf16.mxu0 0
    %661 = vmatpush1.bf16.msra.mxu0 0
    %662 = vmatprep.mubr.bf16.mxu0 0
    %663 = vmatmul.mubr.bf16.gmra.mrb[0].mxu0 %v628
    %v664 = vpop.f32.mrb[0].mxu0
    %v665 = vadd.f32 0.0, %v664
    %v666 = vpop.f32.mrb[0].mxu0
    %v667 = vpop.f32.mrb[0].mxu0
    %v668 = vadd.f32 0.0, %v667
    %v669 = vpop.f32.mrb[0].mxu0
    %670 = vdwg.mxu0
    %v671 = vpack.c.bf16 %v668, %v665
    %v674 = vunpack.c.l.b16 %v198
    %v675 = vunpack.c.l.b16 %v199
    %v676 = vpack.c.b16 %v675, %v674
    %v679 = vsel %vm205, %v671, 0
    %681 = vmatprep.subr.bf16.mxu0 0
    %682 = vmatpush1.bf16.msra.mxu0 %v676
    %683 = vmatprep.subr.bf16.mxu0 0
    %684 = vmatpush1.bf16.msra.mxu0 0
    %685 = vmatprep.subr.bf16.mxu0 0
    %686 = vmatpush1.bf16.msra.mxu0 0
    %687 = vmatprep.subr.bf16.mxu0 0
    %688 = vmatpush1.bf16.msra.mxu0 0
    %689 = vmatprep.subr.bf16.mxu0 0
    %690 = vmatpush1.bf16.msra.mxu0 0
    %691 = vmatprep.subr.bf16.mxu0 0
    %692 = vmatpush1.bf16.msra.mxu0 0
    %693 = vmatprep.subr.bf16.mxu0 0
    %694 = vmatpush1.bf16.msra.mxu0 0
    %695 = vmatprep.subr.bf16.mxu0 0
    %696 = vmatpush1.bf16.msra.mxu0 0
    %697 = vmatprep.subr.bf16.mxu0 0
    %698 = vmatpush1.bf16.msra.mxu0 0
    %699 = vmatprep.subr.bf16.mxu0 0
    %700 = vmatpush1.bf16.msra.mxu0 0
    %701 = vmatprep.subr.bf16.mxu0 0
    %702 = vmatpush1.bf16.msra.mxu0 0
    %703 = vmatprep.subr.bf16.mxu0 0
    %704 = vmatpush1.bf16.msra.mxu0 0
    %705 = vmatprep.subr.bf16.mxu0 0
    %706 = vmatpush1.bf16.msra.mxu0 0
    %707 = vmatprep.subr.bf16.mxu0 0
    %708 = vmatpush1.bf16.msra.mxu0 0
    %709 = vmatprep.subr.bf16.mxu0 0
    %710 = vmatpush1.bf16.msra.mxu0 0
    %711 = vmatprep.subr.bf16.mxu0 0
    %712 = vmatpush1.bf16.msra.mxu0 0
    %713 = vmatprep.mubr.bf16.mxu0 0
    %714 = vmatmul.mubr.bf16.gmra.mrb[0].mxu0 %v679
    %v715 = vpop.f32.mrb[0].mxu0
    %v716 = vadd.f32 0.0, %v715
    %v717 = vpop.f32.mrb[0].mxu0
    %v718 = vpop.f32.mrb[0].mxu0
    %v719 = vadd.f32 0.0, %v718
    %v720 = vpop.f32.mrb[0].mxu0
    %721 = vdwg.mxu0
    %v722 = vadd.f32 %v542, %v716
    %v723 = vadd.f32 %v545, %v719
    %724 = vrot.lane.b32.xlu0 %v182, 80
    %v725 = vpop.permute.xlu0 %724
    %726 = vrot.lane.b32.xlu0 %v182, 16
    %v727 = vpop.permute.xlu0 %726
    %v729 = vsel %vm205, %v725, 0
    %v732 = vsel %vm205, %v727, 0
    %734 = vmatprep.subr.bf16.mxu0 0
    %735 = vmatpush1.bf16.xpose.msra.mxu0 %v732
    %736 = vmatprep.subr.bf16.mxu0 0
    %737 = vmatpush1.bf16.xpose.msra.mxu0 0
    %738 = vmatprep.subr.bf16.mxu0 0
    %739 = vmatpush1.bf16.xpose.msra.mxu0 0
    %740 = vmatprep.subr.bf16.mxu0 0
    %741 = vmatpush1.bf16.xpose.msra.mxu0 0
    %742 = vmatprep.subr.bf16.mxu0 0
    %743 = vmatpush1.bf16.xpose.msra.mxu0 0
    %744 = vmatprep.subr.bf16.mxu0 0
    %745 = vmatpush1.bf16.xpose.msra.mxu0 0
    %746 = vmatprep.subr.bf16.mxu0 0
    %747 = vmatpush1.bf16.xpose.msra.mxu0 0
    %748 = vmatprep.subr.bf16.mxu0 0
    %749 = vmatpush1.bf16.xpose.msra.mxu0 0
    %750 = vmatprep.subr.bf16.mxu0 0
    %751 = vmatpush1.bf16.xpose.msra.mxu0 0
    %752 = vmatprep.subr.bf16.mxu0 0
    %753 = vmatpush1.bf16.xpose.msra.mxu0 0
    %754 = vmatprep.subr.bf16.mxu0 0
    %755 = vmatpush1.bf16.xpose.msra.mxu0 0
    %756 = vmatprep.subr.bf16.mxu0 0
    %757 = vmatpush1.bf16.xpose.msra.mxu0 0
    %758 = vmatprep.subr.bf16.mxu0 0
    %759 = vmatpush1.bf16.xpose.msra.mxu0 0
    %760 = vmatprep.subr.bf16.mxu0 0
    %761 = vmatpush1.bf16.xpose.msra.mxu0 0
    %762 = vmatprep.subr.bf16.mxu0 0
    %763 = vmatpush1.bf16.xpose.msra.mxu0 0
    %764 = vmatprep.subr.bf16.mxu0 0
    %765 = vmatpush1.bf16.xpose.msra.mxu0 0
    %766 = vmatprep.mubr.bf16.mxu0 0
    %767 = vmatmul.mubr.bf16.gmra.mrb[0].mxu0 %v729
    %v768 = vpop.f32.mrb[0].mxu0
    %v769 = vadd.f32 0.0, %v768
    %v770 = vpop.f32.mrb[0].mxu0
    %v771 = vpop.f32.mrb[0].mxu0
    %v772 = vadd.f32 0.0, %v771
    %v773 = vpop.f32.mrb[0].mxu0
    %774 = vdwg.mxu0
    %v775 = vsel %vm191, %v769, -1e+30
    %v776 = vsel %vm192, %v772, -1e+30
    %v777 = vsel %vm205, %v775, -inf
    %778 = vmax.xlane.f32.xlu0 %v777
    %v779 = vpop.xlane.xlu0 %778
    %v780 = vsel %vm205, %v776, -inf
    %781 = vmax.xlane.f32.xlu0 %v780
    %v782 = vpop.xlane.xlu0 %781
    %v783 = vsub.f32 %v775, %v779
    %v784 = vsub.f32 %v776, %v782
    %v785 = vmul.f32 %v783, 1.442695
    %v786 = vpow.pop %v785
    %v787 = vmul.f32 %v784, 1.442695
    %v788 = vpow.pop %v787
    %v789 = vsel %vm205, %v786, 0.0
    %790 = vadd.xlane.f32.xlu0 %v789
    %v791 = vpop.xlane.xlu0 %790
    %v792 = vsel %vm205, %v788, 0.0
    %793 = vadd.xlane.f32.xlu0 %v792
    %v794 = vpop.xlane.xlu0 %793
    %v795 = vrcp.pop %v791
    %v796 = vrcp.pop %v794
    %v797 = vmul.f32 %v786, %v795
    %v798 = vmul.f32 %v788, %v796
    %v799 = vpack.c.bf16 %v798, %v797
    %800 = vrot.lane.b32.xlu0 %v183, 80
    %v801 = vpop.permute.xlu0 %800
    %v804 = vsel %vm205, %v799, 0
    %806 = vmatprep.subr.bf16.mxu0 0
    %807 = vmatpush1.bf16.msra.mxu0 %v801
    %808 = vmatprep.subr.bf16.mxu0 0
    %809 = vmatpush1.bf16.msra.mxu0 0
    %810 = vmatprep.subr.bf16.mxu0 0
    %811 = vmatpush1.bf16.msra.mxu0 0
    %812 = vmatprep.subr.bf16.mxu0 0
    %813 = vmatpush1.bf16.msra.mxu0 0
    %814 = vmatprep.subr.bf16.mxu0 0
    %815 = vmatpush1.bf16.msra.mxu0 0
    %816 = vmatprep.subr.bf16.mxu0 0
    %817 = vmatpush1.bf16.msra.mxu0 0
    %818 = vmatprep.subr.bf16.mxu0 0
    %819 = vmatpush1.bf16.msra.mxu0 0
    %820 = vmatprep.subr.bf16.mxu0 0
    %821 = vmatpush1.bf16.msra.mxu0 0
    %822 = vmatprep.subr.bf16.mxu0 0
    %823 = vmatpush1.bf16.msra.mxu0 0
    %824 = vmatprep.subr.bf16.mxu0 0
    %825 = vmatpush1.bf16.msra.mxu0 0
    %826 = vmatprep.subr.bf16.mxu0 0
    %827 = vmatpush1.bf16.msra.mxu0 0
    %828 = vmatprep.subr.bf16.mxu0 0
    %829 = vmatpush1.bf16.msra.mxu0 0
    %830 = vmatprep.subr.bf16.mxu0 0
    %831 = vmatpush1.bf16.msra.mxu0 0
    %832 = vmatprep.subr.bf16.mxu0 0
    %833 = vmatpush1.bf16.msra.mxu0 0
    %834 = vmatprep.subr.bf16.mxu0 0
    %835 = vmatpush1.bf16.msra.mxu0 0
    %836 = vmatprep.subr.bf16.mxu0 0
    %837 = vmatpush1.bf16.msra.mxu0 0
    %838 = vmatprep.mubr.bf16.mxu0 0
    %839 = vmatmul.mubr.bf16.gmra.mrb[0].mxu0 %v804
    %v840 = vpop.f32.mrb[0].mxu0
    %v841 = vadd.f32 0.0, %v840
    %v842 = vpop.f32.mrb[0].mxu0
    %v843 = vpop.f32.mrb[0].mxu0
    %v844 = vadd.f32 0.0, %v843
    %v845 = vpop.f32.mrb[0].mxu0
    %846 = vdwg.mxu0
    %v847 = vpack.c.bf16 %v844, %v841
    %v850 = vunpack.c.l.b16 %v200
    %v851 = vunpack.c.l.b16 %v201
    %v852 = vpack.c.b16 %v851, %v850
    %v855 = vsel %vm205, %v847, 0
    %857 = vmatprep.subr.bf16.mxu0 0
    %858 = vmatpush1.bf16.msra.mxu0 %v852
    %859 = vmatprep.subr.bf16.mxu0 0
    %860 = vmatpush1.bf16.msra.mxu0 0
    %861 = vmatprep.subr.bf16.mxu0 0
    %862 = vmatpush1.bf16.msra.mxu0 0
    %863 = vmatprep.subr.bf16.mxu0 0
    %864 = vmatpush1.bf16.msra.mxu0 0
    %865 = vmatprep.subr.bf16.mxu0 0
    %866 = vmatpush1.bf16.msra.mxu0 0
    %867 = vmatprep.subr.bf16.mxu0 0
    %868 = vmatpush1.bf16.msra.mxu0 0
    %869 = vmatprep.subr.bf16.mxu0 0
    %870 = vmatpush1.bf16.msra.mxu0 0
    %871 = vmatprep.subr.bf16.mxu0 0
    %872 = vmatpush1.bf16.msra.mxu0 0
    %873 = vmatprep.subr.bf16.mxu0 0
    %874 = vmatpush1.bf16.msra.mxu0 0
    %875 = vmatprep.subr.bf16.mxu0 0
    %876 = vmatpush1.bf16.msra.mxu0 0
    %877 = vmatprep.subr.bf16.mxu0 0
    %878 = vmatpush1.bf16.msra.mxu0 0
    %879 = vmatprep.subr.bf16.mxu0 0
    %880 = vmatpush1.bf16.msra.mxu0 0
    %881 = vmatprep.subr.bf16.mxu0 0
    %882 = vmatpush1.bf16.msra.mxu0 0
    %883 = vmatprep.subr.bf16.mxu0 0
    %884 = vmatpush1.bf16.msra.mxu0 0
    %885 = vmatprep.subr.bf16.mxu0 0
    %886 = vmatpush1.bf16.msra.mxu0 0
    %887 = vmatprep.subr.bf16.mxu0 0
    %888 = vmatpush1.bf16.msra.mxu0 0
    %889 = vmatprep.mubr.bf16.mxu0 0
    %890 = vmatmul.mubr.bf16.gmra.mrb[0].mxu0 %v855
    %v891 = vpop.f32.mrb[0].mxu0
    %v892 = vadd.f32 0.0, %v891
    %v893 = vpop.f32.mrb[0].mxu0
    %v894 = vpop.f32.mrb[0].mxu0
    %v895 = vadd.f32 0.0, %v894
    %v896 = vpop.f32.mrb[0].mxu0
    %897 = vdwg.mxu0
    %v898 = vadd.f32 %v722, %v892
    %v899 = vadd.f32 %v723, %v895
    %v901 = vlaneseq
    %v902 = vshrl.u32 %v901, 7
    %v903 = vsub.s32 0, %v902
    %v904 = vrot.slane %v193, %v903
    %v906 = vadd.f32 %v898, %v904
    %v907 = vadd.f32 %v899, %v904
    %v908 = vpack.c.bf16 %v907, %v906
    %v910 = vunpack.c.l.b16 %v908
    %v911 = vunpack.c.h.b16 %v908
    %v912 = vpack.c.b16 %v910, %v910
    %v913 = vpack.c.b16 %v911, %v911
    %vm916 = vcmask 519168
    %917 = vst.msk [vmem:[#allocation8] sm:$0xf] %vm916, %v912
    %918 = vst.msk [vmem:[#allocation8 + $0x4] sm:$0xf] %vm916, %v913
    %920 = vrot.lane.b32.xlu0 %v184, 64
    %v921 = vpop.permute.xlu0 %920
    %v923 = vsel %vm205, %v184, 0
    %v926 = vsel %vm205, %v921, 0
    %928 = vmatprep.subr.bf16.mxu0 0
    %929 = vmatpush1.bf16.xpose.msra.mxu0 %v926
    %930 = vmatprep.subr.bf16.mxu0 0
    %931 = vmatpush1.bf16.xpose.msra.mxu0 0
    %932 = vmatprep.subr.bf16.mxu0 0
    %933 = vmatpush1.bf16.xpose.msra.mxu0 0
    %934 = vmatprep.subr.bf16.mxu0 0
    %935 = vmatpush1.bf16.xpose.msra.mxu0 0
    %936 = vmatprep.subr.bf16.mxu0 0
    %937 = vmatpush1.bf16.xpose.msra.mxu0 0
    %938 = vmatprep.subr.bf16.mxu0 0
    %939 = vmatpush1.bf16.xpose.msra.mxu0 0
    %940 = vmatprep.subr.bf16.mxu0 0
    %941 = vmatpush1.bf16.xpose.msra.mxu0 0
    %942 = vmatprep.subr.bf16.mxu0 0
    %943 = vmatpush1.bf16.xpose.msra.mxu0 0
    %944 = vmatprep.subr.bf16.mxu0 0
    %945 = vmatpush1.bf16.xpose.msra.mxu0 0
    %946 = vmatprep.subr.bf16.mxu0 0
    %947 = vmatpush1.bf16.xpose.msra.mxu0 0
    %948 = vmatprep.subr.bf16.mxu0 0
    %949 = vmatpush1.bf16.xpose.msra.mxu0 0
    %950 = vmatprep.subr.bf16.mxu0 0
    %951 = vmatpush1.bf16.xpose.msra.mxu0 0
    %952 = vmatprep.subr.bf16.mxu0 0
    %953 = vmatpush1.bf16.xpose.msra.mxu0 0
    %954 = vmatprep.subr.bf16.mxu0 0
    %955 = vmatpush1.bf16.xpose.msra.mxu0 0
    %956 = vmatprep.subr.bf16.mxu0 0
    %957 = vmatpush1.bf16.xpose.msra.mxu0 0
    %958 = vmatprep.subr.bf16.mxu0 0
    %959 = vmatpush1.bf16.xpose.msra.mxu0 0
    %960 = vmatprep.mubr.bf16.mxu0 0
    %961 = vmatmul.mubr.bf16.gmra.mrb[0].mxu0 %v923
    %v962 = vpop.f32.mrb[0].mxu0
    %v963 = vadd.f32 0.0, %v962
    %v964 = vpop.f32.mrb[0].mxu0
    %v965 = vpop.f32.mrb[0].mxu0
    %v966 = vadd.f32 0.0, %v965
    %v967 = vpop.f32.mrb[0].mxu0
    %968 = vdwg.mxu0
    %v969 = vsel %vm191, %v963, -1e+30
    %v970 = vsel %vm192, %v966, -1e+30
    %v971 = vsel %vm205, %v969, -inf
    %972 = vmax.xlane.f32.xlu0 %v971
    %v973 = vpop.xlane.xlu0 %972
    %v974 = vsel %vm205, %v970, -inf
    %975 = vmax.xlane.f32.xlu0 %v974
    %v976 = vpop.xlane.xlu0 %975
    %v977 = vsub.f32 %v969, %v973
    %v978 = vsub.f32 %v970, %v976
    %v979 = vmul.f32 %v977, 1.442695
    %v980 = vpow.pop %v979
    %v981 = vmul.f32 %v978, 1.442695
    %v982 = vpow.pop %v981
    %v983 = vsel %vm205, %v980, 0.0
    %984 = vadd.xlane.f32.xlu0 %v983
    %v985 = vpop.xlane.xlu0 %984
    %v986 = vsel %vm205, %v982, 0.0
    %987 = vadd.xlane.f32.xlu0 %v986
    %v988 = vpop.xlane.xlu0 %987
    %v989 = vrcp.pop %v985
    %v990 = vrcp.pop %v988
    %v991 = vmul.f32 %v980, %v989
    %v992 = vmul.f32 %v982, %v990
    %v993 = vpack.c.bf16 %v992, %v991
    %v995 = vsel %vm205, %v993, 0
    %997 = vmatprep.subr.bf16.mxu0 0
    %998 = vmatpush1.bf16.msra.mxu0 %v185
    %999 = vmatprep.subr.bf16.mxu0 0
    %1000 = vmatpush1.bf16.msra.mxu0 0
    %1001 = vmatprep.subr.bf16.mxu0 0
    %1002 = vmatpush1.bf16.msra.mxu0 0
    %1003 = vmatprep.subr.bf16.mxu0 0
    %1004 = vmatpush1.bf16.msra.mxu0 0
    %1005 = vmatprep.subr.bf16.mxu0 0
    %1006 = vmatpush1.bf16.msra.mxu0 0
    %1007 = vmatprep.subr.bf16.mxu0 0
    %1008 = vmatpush1.bf16.msra.mxu0 0
    %1009 = vmatprep.subr.bf16.mxu0 0
    %1010 = vmatpush1.bf16.msra.mxu0 0
    %1011 = vmatprep.subr.bf16.mxu0 0
    %1012 = vmatpush1.bf16.msra.mxu0 0
    %1013 = vmatprep.subr.bf16.mxu0 0
    %1014 = vmatpush1.bf16.msra.mxu0 0
    %1015 = vmatprep.subr.bf16.mxu0 0
    %1016 = vmatpush1.bf16.msra.mxu0 0
    %1017 = vmatprep.subr.bf16.mxu0 0
    %1018 = vmatpush1.bf16.msra.mxu0 0
    %1019 = vmatprep.subr.bf16.mxu0 0
    %1020 = vmatpush1.bf16.msra.mxu0 0
    %1021 = vmatprep.subr.bf16.mxu0 0
    %1022 = vmatpush1.bf16.msra.mxu0 0
    %1023 = vmatprep.subr.bf16.mxu0 0
    %1024 = vmatpush1.bf16.msra.mxu0 0
    %1025 = vmatprep.subr.bf16.mxu0 0
    %1026 = vmatpush1.bf16.msra.mxu0 0
    %1027 = vmatprep.subr.bf16.mxu0 0
    %1028 = vmatpush1.bf16.msra.mxu0 0
    %1029 = vmatprep.mubr.bf16.mxu0 0
    %1030 = vmatmul.mubr.bf16.gmra.mrb[0].mxu0 %v995
    %v1031 = vpop.f32.mrb[0].mxu0
    %v1032 = vadd.f32 0.0, %v1031
    %v1033 = vpop.f32.mrb[0].mxu0
    %v1034 = vpop.f32.mrb[0].mxu0
    %v1035 = vadd.f32 0.0, %v1034
    %v1036 = vpop.f32.mrb[0].mxu0
    %1037 = vdwg.mxu0
    %v1038 = vpack.c.bf16 %v1035, %v1032
    %1039 = vrot.lane.b32.xlu0 %v184, 112
    %v1040 = vpop.permute.xlu0 %1039
    %1041 = vrot.lane.b32.xlu0 %v184, 48
    %v1042 = vpop.permute.xlu0 %1041
    %v1044 = vsel %vm205, %v1040, 0
    %v1047 = vsel %vm205, %v1042, 0
    %1049 = vmatprep.subr.bf16.mxu0 0
    %1050 = vmatpush1.bf16.xpose.msra.mxu0 %v1047
    %1051 = vmatprep.subr.bf16.mxu0 0
    %1052 = vmatpush1.bf16.xpose.msra.mxu0 0
    %1053 = vmatprep.subr.bf16.mxu0 0
    %1054 = vmatpush1.bf16.xpose.msra.mxu0 0
    %1055 = vmatprep.subr.bf16.mxu0 0
    %1056 = vmatpush1.bf16.xpose.msra.mxu0 0
    %1057 = vmatprep.subr.bf16.mxu0 0
    %1058 = vmatpush1.bf16.xpose.msra.mxu0 0
    %1059 = vmatprep.subr.bf16.mxu0 0
    %1060 = vmatpush1.bf16.xpose.msra.mxu0 0
    %1061 = vmatprep.subr.bf16.mxu0 0
    %1062 = vmatpush1.bf16.xpose.msra.mxu0 0
    %1063 = vmatprep.subr.bf16.mxu0 0
    %1064 = vmatpush1.bf16.xpose.msra.mxu0 0
    %1065 = vmatprep.subr.bf16.mxu0 0
    %1066 = vmatpush1.bf16.xpose.msra.mxu0 0
    %1067 = vmatprep.subr.bf16.mxu0 0
    %1068 = vmatpush1.bf16.xpose.msra.mxu0 0
    %1069 = vmatprep.subr.bf16.mxu0 0
    %1070 = vmatpush1.bf16.xpose.msra.mxu0 0
    %1071 = vmatprep.subr.bf16.mxu0 0
    %1072 = vmatpush1.bf16.xpose.msra.mxu0 0
    %1073 = vmatprep.subr.bf16.mxu0 0
    %1074 = vmatpush1.bf16.xpose.msra.mxu0 0
    %1075 = vmatprep.subr.bf16.mxu0 0
    %1076 = vmatpush1.bf16.xpose.msra.mxu0 0
    %1077 = vmatprep.subr.bf16.mxu0 0
    %1078 = vmatpush1.bf16.xpose.msra.mxu0 0
    %1079 = vmatprep.subr.bf16.mxu0 0
    %1080 = vmatpush1.bf16.xpose.msra.mxu0 0
    %1081 = vmatprep.mubr.bf16.mxu0 0
    %1082 = vmatmul.mubr.bf16.gmra.mrb[0].mxu0 %v1044
    %v1083 = vpop.f32.mrb[0].mxu0
    %v1084 = vadd.f32 0.0, %v1083
    %v1085 = vpop.f32.mrb[0].mxu0
    %v1086 = vpop.f32.mrb[0].mxu0
    %v1087 = vadd.f32 0.0, %v1086
    %v1088 = vpop.f32.mrb[0].mxu0
    %1089 = vdwg.mxu0
    %v1090 = vsel %vm191, %v1084, -1e+30
    %v1091 = vsel %vm192, %v1087, -1e+30
    %v1092 = vsel %vm205, %v1090, -inf
    %1093 = vmax.xlane.f32.xlu0 %v1092
    %v1094 = vpop.xlane.xlu0 %1093
    %v1095 = vsel %vm205, %v1091, -inf
    %1096 = vmax.xlane.f32.xlu0 %v1095
    %v1097 = vpop.xlane.xlu0 %1096
    %v1098 = vsub.f32 %v1090, %v1094
    %v1099 = vsub.f32 %v1091, %v1097
    %v1100 = vmul.f32 %v1098, 1.442695
    %v1101 = vpow.pop %v1100
    %v1102 = vmul.f32 %v1099, 1.442695
    %v1103 = vpow.pop %v1102
    %v1104 = vsel %vm205, %v1101, 0.0
    %1105 = vadd.xlane.f32.xlu0 %v1104
    %v1106 = vpop.xlane.xlu0 %1105
    %v1107 = vsel %vm205, %v1103, 0.0
    %1108 = vadd.xlane.f32.xlu0 %v1107
    %v1109 = vpop.xlane.xlu0 %1108
    %v1110 = vrcp.pop %v1106
    %v1111 = vrcp.pop %v1109
    %v1112 = vmul.f32 %v1101, %v1110
    %v1113 = vmul.f32 %v1103, %v1111
    %v1114 = vpack.c.bf16 %v1113, %v1112
    %1116 = vrot.lane.b32.xlu0 %v185, 112
    %v1117 = vpop.permute.xlu0 %1116
    %v1120 = vsel %vm205, %v1114, 0
    %1122 = vmatprep.subr.bf16.mxu0 0
    %1123 = vmatpush1.bf16.msra.mxu0 %v1117
    %1124 = vmatprep.subr.bf16.mxu0 0
    %1125 = vmatpush1.bf16.msra.mxu0 0
    %1126 = vmatprep.subr.bf16.mxu0 0
    %1127 = vmatpush1.bf16.msra.mxu0 0
    %1128 = vmatprep.subr.bf16.mxu0 0
    %1129 = vmatpush1.bf16.msra.mxu0 0
    %1130 = vmatprep.subr.bf16.mxu0 0
    %1131 = vmatpush1.bf16.msra.mxu0 0
    %1132 = vmatprep.subr.bf16.mxu0 0
    %1133 = vmatpush1.bf16.msra.mxu0 0
    %1134 = vmatprep.subr.bf16.mxu0 0
    %1135 = vmatpush1.bf16.msra.mxu0 0
    %1136 = vmatprep.subr.bf16.mxu0 0
    %1137 = vmatpush1.bf16.msra.mxu0 0
    %1138 = vmatprep.subr.bf16.mxu0 0
    %1139 = vmatpush1.bf16.msra.mxu0 0
    %1140 = vmatprep.subr.bf16.mxu0 0
    %1141 = vmatpush1.bf16.msra.mxu0 0
    %1142 = vmatprep.subr.bf16.mxu0 0
    %1143 = vmatpush1.bf16.msra.mxu0 0
    %1144 = vmatprep.subr.bf16.mxu0 0
    %1145 = vmatpush1.bf16.msra.mxu0 0
    %1146 = vmatprep.subr.bf16.mxu0 0
    %1147 = vmatpush1.bf16.msra.mxu0 0
    %1148 = vmatprep.subr.bf16.mxu0 0
    %1149 = vmatpush1.bf16.msra.mxu0 0
    %1150 = vmatprep.subr.bf16.mxu0 0
    %1151 = vmatpush1.bf16.msra.mxu0 0
    %1152 = vmatprep.subr.bf16.mxu0 0
    %1153 = vmatpush1.bf16.msra.mxu0 0
    %1154 = vmatprep.mubr.bf16.mxu0 0
    %1155 = vmatmul.mubr.bf16.gmra.mrb[0].mxu0 %v1120
    %v1156 = vpop.f32.mrb[0].mxu0
    %v1157 = vadd.f32 0.0, %v1156
    %v1158 = vpop.f32.mrb[0].mxu0
    %v1159 = vpop.f32.mrb[0].mxu0
    %v1160 = vadd.f32 0.0, %v1159
    %v1161 = vpop.f32.mrb[0].mxu0
    %1162 = vdwg.mxu0
    %v1163 = vpack.c.bf16 %v1160, %v1157
    %v1165 = vsel %vm205, %v1163, 0
    %1167 = vmatprep.subr.bf16.mxu0 0
    %1168 = vmatpush1.bf16.msra.mxu0 %v452
    %1169 = vmatprep.subr.bf16.mxu0 0
    %1170 = vmatpush1.bf16.msra.mxu0 0
    %1171 = vmatprep.subr.bf16.mxu0 0
    %1172 = vmatpush1.bf16.msra.mxu0 0
    %1173 = vmatprep.subr.bf16.mxu0 0
    %1174 = vmatpush1.bf16.msra.mxu0 0
    %1175 = vmatprep.subr.bf16.mxu0 0
    %1176 = vmatpush1.bf16.msra.mxu0 0
    %1177 = vmatprep.subr.bf16.mxu0 0
    %1178 = vmatpush1.bf16.msra.mxu0 0
    %1179 = vmatprep.subr.bf16.mxu0 0
    %1180 = vmatpush1.bf16.msra.mxu0 0
    %1181 = vmatprep.subr.bf16.mxu0 0
    %1182 = vmatpush1.bf16.msra.mxu0 0
    %1183 = vmatprep.subr.bf16.mxu0 0
    %1184 = vmatpush1.bf16.msra.mxu0 0
    %1185 = vmatprep.subr.bf16.mxu0 0
    %1186 = vmatpush1.bf16.msra.mxu0 0
    %1187 = vmatprep.subr.bf16.mxu0 0
    %1188 = vmatpush1.bf16.msra.mxu0 0
    %1189 = vmatprep.subr.bf16.mxu0 0
    %1190 = vmatpush1.bf16.msra.mxu0 0
    %1191 = vmatprep.subr.bf16.mxu0 0
    %1192 = vmatpush1.bf16.msra.mxu0 0
    %1193 = vmatprep.subr.bf16.mxu0 0
    %1194 = vmatpush1.bf16.msra.mxu0 0
    %1195 = vmatprep.subr.bf16.mxu0 0
    %1196 = vmatpush1.bf16.msra.mxu0 0
    %1197 = vmatprep.subr.bf16.mxu0 0
    %1198 = vmatpush1.bf16.msra.mxu0 0
    %1199 = vmatprep.mubr.bf16.mxu0 0
    %1200 = vmatmul.mubr.bf16.gmra.mrb[0].mxu0 %v1165
    %v1201 = vpop.f32.mrb[0].mxu0
    %v1202 = vadd.f32 0.0, %v1201
    %v1203 = vpop.f32.mrb[0].mxu0
    %v1204 = vpop.f32.mrb[0].mxu0
    %v1205 = vadd.f32 0.0, %v1204
    %v1206 = vpop.f32.mrb[0].mxu0
    %1207 = vdwg.mxu0
    %v1209 = vsel %vm205, %v1038, 0
    %1211 = vmatprep.subr.bf16.mxu0 0
    %1212 = vmatpush1.bf16.msra.mxu0 %v502
    %1213 = vmatprep.subr.bf16.mxu0 0
    %1214 = vmatpush1.bf16.msra.mxu0 0
    %1215 = vmatprep.subr.bf16.mxu0 0
    %1216 = vmatpush1.bf16.msra.mxu0 0
    %1217 = vmatprep.subr.bf16.mxu0 0
    %1218 = vmatpush1.bf16.msra.mxu0 0
    %1219 = vmatprep.subr.bf16.mxu0 0
    %1220 = vmatpush1.bf16.msra.mxu0 0
    %1221 = vmatprep.subr.bf16.mxu0 0
    %1222 = vmatpush1.bf16.msra.mxu0 0
    %1223 = vmatprep.subr.bf16.mxu0 0
    %1224 = vmatpush1.bf16.msra.mxu0 0
    %1225 = vmatprep.subr.bf16.mxu0 0
    %1226 = vmatpush1.bf16.msra.mxu0 0
    %1227 = vmatprep.subr.bf16.mxu0 0
    %1228 = vmatpush1.bf16.msra.mxu0 0
    %1229 = vmatprep.subr.bf16.mxu0 0
    %1230 = vmatpush1.bf16.msra.mxu0 0
    %1231 = vmatprep.subr.bf16.mxu0 0
    %1232 = vmatpush1.bf16.msra.mxu0 0
    %1233 = vmatprep.subr.bf16.mxu0 0
    %1234 = vmatpush1.bf16.msra.mxu0 0
    %1235 = vmatprep.subr.bf16.mxu0 0
    %1236 = vmatpush1.bf16.msra.mxu0 0
    %1237 = vmatprep.subr.bf16.mxu0 0
    %1238 = vmatpush1.bf16.msra.mxu0 0
    %1239 = vmatprep.subr.bf16.mxu0 0
    %1240 = vmatpush1.bf16.msra.mxu0 0
    %1241 = vmatprep.subr.bf16.mxu0 0
    %1242 = vmatpush1.bf16.msra.mxu0 0
    %1243 = vmatprep.mubr.bf16.mxu0 0
    %1244 = vmatmul.mubr.bf16.gmra.mrb[0].mxu0 %v1209
    %v1245 = vpop.f32.mrb[0].mxu0
    %v1246 = vadd.f32 %v1202, %v1245
    %v1247 = vpop.f32.mrb[0].mxu0
    %v1248 = vpop.f32.mrb[0].mxu0
    %v1249 = vadd.f32 %v1205, %v1248
    %v1250 = vpop.f32.mrb[0].mxu0
    %1251 = vdwg.mxu0
    %1252 = vrot.lane.b32.xlu0 %v184, 96
    %v1253 = vpop.permute.xlu0 %1252
    %1254 = vrot.lane.b32.xlu0 %v184, 32
    %v1255 = vpop.permute.xlu0 %1254
    %v1257 = vsel %vm205, %v1253, 0
    %v1260 = vsel %vm205, %v1255, 0
    %1262 = vmatprep.subr.bf16.mxu0 0
    %1263 = vmatpush1.bf16.xpose.msra.mxu0 %v1260
    %1264 = vmatprep.subr.bf16.mxu0 0
    %1265 = vmatpush1.bf16.xpose.msra.mxu0 0
    %1266 = vmatprep.subr.bf16.mxu0 0
    %1267 = vmatpush1.bf16.xpose.msra.mxu0 0
    %1268 = vmatprep.subr.bf16.mxu0 0
    %1269 = vmatpush1.bf16.xpose.msra.mxu0 0
    %1270 = vmatprep.subr.bf16.mxu0 0
    %1271 = vmatpush1.bf16.xpose.msra.mxu0 0
    %1272 = vmatprep.subr.bf16.mxu0 0
    %1273 = vmatpush1.bf16.xpose.msra.mxu0 0
    %1274 = vmatprep.subr.bf16.mxu0 0
    %1275 = vmatpush1.bf16.xpose.msra.mxu0 0
    %1276 = vmatprep.subr.bf16.mxu0 0
    %1277 = vmatpush1.bf16.xpose.msra.mxu0 0
    %1278 = vmatprep.subr.bf16.mxu0 0
    %1279 = vmatpush1.bf16.xpose.msra.mxu0 0
    %1280 = vmatprep.subr.bf16.mxu0 0
    %1281 = vmatpush1.bf16.xpose.msra.mxu0 0
    %1282 = vmatprep.subr.bf16.mxu0 0
    %1283 = vmatpush1.bf16.xpose.msra.mxu0 0
    %1284 = vmatprep.subr.bf16.mxu0 0
    %1285 = vmatpush1.bf16.xpose.msra.mxu0 0
    %1286 = vmatprep.subr.bf16.mxu0 0
    %1287 = vmatpush1.bf16.xpose.msra.mxu0 0
    %1288 = vmatprep.subr.bf16.mxu0 0
    %1289 = vmatpush1.bf16.xpose.msra.mxu0 0
    %1290 = vmatprep.subr.bf16.mxu0 0
    %1291 = vmatpush1.bf16.xpose.msra.mxu0 0
    %1292 = vmatprep.subr.bf16.mxu0 0
    %1293 = vmatpush1.bf16.xpose.msra.mxu0 0
    %1294 = vmatprep.mubr.bf16.mxu0 0
    %1295 = vmatmul.mubr.bf16.gmra.mrb[0].mxu0 %v1257
    %v1296 = vpop.f32.mrb[0].mxu0
    %v1297 = vadd.f32 0.0, %v1296
    %v1298 = vpop.f32.mrb[0].mxu0
    %v1299 = vpop.f32.mrb[0].mxu0
    %v1300 = vadd.f32 0.0, %v1299
    %v1301 = vpop.f32.mrb[0].mxu0
    %1302 = vdwg.mxu0
    %v1303 = vsel %vm191, %v1297, -1e+30
    %v1304 = vsel %vm192, %v1300, -1e+30
    %v1305 = vsel %vm205, %v1303, -inf
    %1306 = vmax.xlane.f32.xlu0 %v1305
    %v1307 = vpop.xlane.xlu0 %1306
    %v1308 = vsel %vm205, %v1304, -inf
    %1309 = vmax.xlane.f32.xlu0 %v1308
    %v1310 = vpop.xlane.xlu0 %1309
    %v1311 = vsub.f32 %v1303, %v1307
    %v1312 = vsub.f32 %v1304, %v1310
    %v1313 = vmul.f32 %v1311, 1.442695
    %v1314 = vpow.pop %v1313
    %v1315 = vmul.f32 %v1312, 1.442695
    %v1316 = vpow.pop %v1315
    %v1317 = vsel %vm205, %v1314, 0.0
    %1318 = vadd.xlane.f32.xlu0 %v1317
    %v1319 = vpop.xlane.xlu0 %1318
    %v1320 = vsel %vm205, %v1316, 0.0
    %1321 = vadd.xlane.f32.xlu0 %v1320
    %v1322 = vpop.xlane.xlu0 %1321
    %v1323 = vrcp.pop %v1319
    %v1324 = vrcp.pop %v1322
    %v1325 = vmul.f32 %v1314, %v1323
    %v1326 = vmul.f32 %v1316, %v1324
    %v1327 = vpack.c.bf16 %v1326, %v1325
    %1328 = vrot.lane.b32.xlu0 %v185, 96
    %v1329 = vpop.permute.xlu0 %1328
    %v1332 = vsel %vm205, %v1327, 0
    %1334 = vmatprep.subr.bf16.mxu0 0
    %1335 = vmatpush1.bf16.msra.mxu0 %v1329
    %1336 = vmatprep.subr.bf16.mxu0 0
    %1337 = vmatpush1.bf16.msra.mxu0 0
    %1338 = vmatprep.subr.bf16.mxu0 0
    %1339 = vmatpush1.bf16.msra.mxu0 0
    %1340 = vmatprep.subr.bf16.mxu0 0
    %1341 = vmatpush1.bf16.msra.mxu0 0
    %1342 = vmatprep.subr.bf16.mxu0 0
    %1343 = vmatpush1.bf16.msra.mxu0 0
    %1344 = vmatprep.subr.bf16.mxu0 0
    %1345 = vmatpush1.bf16.msra.mxu0 0
    %1346 = vmatprep.subr.bf16.mxu0 0
    %1347 = vmatpush1.bf16.msra.mxu0 0
    %1348 = vmatprep.subr.bf16.mxu0 0
    %1349 = vmatpush1.bf16.msra.mxu0 0
    %1350 = vmatprep.subr.bf16.mxu0 0
    %1351 = vmatpush1.bf16.msra.mxu0 0
    %1352 = vmatprep.subr.bf16.mxu0 0
    %1353 = vmatpush1.bf16.msra.mxu0 0
    %1354 = vmatprep.subr.bf16.mxu0 0
    %1355 = vmatpush1.bf16.msra.mxu0 0
    %1356 = vmatprep.subr.bf16.mxu0 0
    %1357 = vmatpush1.bf16.msra.mxu0 0
    %1358 = vmatprep.subr.bf16.mxu0 0
    %1359 = vmatpush1.bf16.msra.mxu0 0
    %1360 = vmatprep.subr.bf16.mxu0 0
    %1361 = vmatpush1.bf16.msra.mxu0 0
    %1362 = vmatprep.subr.bf16.mxu0 0
    %1363 = vmatpush1.bf16.msra.mxu0 0
    %1364 = vmatprep.subr.bf16.mxu0 0
    %1365 = vmatpush1.bf16.msra.mxu0 0
    %1366 = vmatprep.mubr.bf16.mxu0 0
    %1367 = vmatmul.mubr.bf16.gmra.mrb[0].mxu0 %v1332
    %v1368 = vpop.f32.mrb[0].mxu0
    %v1369 = vadd.f32 0.0, %v1368
    %v1370 = vpop.f32.mrb[0].mxu0
    %v1371 = vpop.f32.mrb[0].mxu0
    %v1372 = vadd.f32 0.0, %v1371
    %v1373 = vpop.f32.mrb[0].mxu0
    %1374 = vdwg.mxu0
    %v1375 = vpack.c.bf16 %v1372, %v1369
    %v1377 = vsel %vm205, %v1375, 0
    %1379 = vmatprep.subr.bf16.mxu0 0
    %1380 = vmatpush1.bf16.msra.mxu0 %v676
    %1381 = vmatprep.subr.bf16.mxu0 0
    %1382 = vmatpush1.bf16.msra.mxu0 0
    %1383 = vmatprep.subr.bf16.mxu0 0
    %1384 = vmatpush1.bf16.msra.mxu0 0
    %1385 = vmatprep.subr.bf16.mxu0 0
    %1386 = vmatpush1.bf16.msra.mxu0 0
    %1387 = vmatprep.subr.bf16.mxu0 0
    %1388 = vmatpush1.bf16.msra.mxu0 0
    %1389 = vmatprep.subr.bf16.mxu0 0
    %1390 = vmatpush1.bf16.msra.mxu0 0
    %1391 = vmatprep.subr.bf16.mxu0 0
    %1392 = vmatpush1.bf16.msra.mxu0 0
    %1393 = vmatprep.subr.bf16.mxu0 0
    %1394 = vmatpush1.bf16.msra.mxu0 0
    %1395 = vmatprep.subr.bf16.mxu0 0
    %1396 = vmatpush1.bf16.msra.mxu0 0
    %1397 = vmatprep.subr.bf16.mxu0 0
    %1398 = vmatpush1.bf16.msra.mxu0 0
    %1399 = vmatprep.subr.bf16.mxu0 0
    %1400 = vmatpush1.bf16.msra.mxu0 0
    %1401 = vmatprep.subr.bf16.mxu0 0
    %1402 = vmatpush1.bf16.msra.mxu0 0
    %1403 = vmatprep.subr.bf16.mxu0 0
    %1404 = vmatpush1.bf16.msra.mxu0 0
    %1405 = vmatprep.subr.bf16.mxu0 0
    %1406 = vmatpush1.bf16.msra.mxu0 0
    %1407 = vmatprep.subr.bf16.mxu0 0
    %1408 = vmatpush1.bf16.msra.mxu0 0
    %1409 = vmatprep.subr.bf16.mxu0 0
    %1410 = vmatpush1.bf16.msra.mxu0 0
    %1411 = vmatprep.mubr.bf16.mxu0 0
    %1412 = vmatmul.mubr.bf16.gmra.mrb[0].mxu0 %v1377
    %v1413 = vpop.f32.mrb[0].mxu0
    %v1414 = vadd.f32 0.0, %v1413
    %v1415 = vpop.f32.mrb[0].mxu0
    %v1416 = vpop.f32.mrb[0].mxu0
    %v1417 = vadd.f32 0.0, %v1416
    %v1418 = vpop.f32.mrb[0].mxu0
    %1419 = vdwg.mxu0
    %v1420 = vadd.f32 %v1246, %v1414
    %v1421 = vadd.f32 %v1249, %v1417
    %1422 = vrot.lane.b32.xlu0 %v184, 80
    %v1423 = vpop.permute.xlu0 %1422
    %1424 = vrot.lane.b32.xlu0 %v184, 16
    %v1425 = vpop.permute.xlu0 %1424
    %v1427 = vsel %vm205, %v1423, 0
    %v1430 = vsel %vm205, %v1425, 0
    %1432 = vmatprep.subr.bf16.mxu0 0
    %1433 = vmatpush1.bf16.xpose.msra.mxu0 %v1430
    %1434 = vmatprep.subr.bf16.mxu0 0
    %1435 = vmatpush1.bf16.xpose.msra.mxu0 0
    %1436 = vmatprep.subr.bf16.mxu0 0
    %1437 = vmatpush1.bf16.xpose.msra.mxu0 0
    %1438 = vmatprep.subr.bf16.mxu0 0
    %1439 = vmatpush1.bf16.xpose.msra.mxu0 0
    %1440 = vmatprep.subr.bf16.mxu0 0
    %1441 = vmatpush1.bf16.xpose.msra.mxu0 0
    %1442 = vmatprep.subr.bf16.mxu0 0
    %1443 = vmatpush1.bf16.xpose.msra.mxu0 0
    %1444 = vmatprep.subr.bf16.mxu0 0
    %1445 = vmatpush1.bf16.xpose.msra.mxu0 0
    %1446 = vmatprep.subr.bf16.mxu0 0
    %1447 = vmatpush1.bf16.xpose.msra.mxu0 0
    %1448 = vmatprep.subr.bf16.mxu0 0
    %1449 = vmatpush1.bf16.xpose.msra.mxu0 0
    %1450 = vmatprep.subr.bf16.mxu0 0
    %1451 = vmatpush1.bf16.xpose.msra.mxu0 0
    %1452 = vmatprep.subr.bf16.mxu0 0
    %1453 = vmatpush1.bf16.xpose.msra.mxu0 0
    %1454 = vmatprep.subr.bf16.mxu0 0
    %1455 = vmatpush1.bf16.xpose.msra.mxu0 0
    %1456 = vmatprep.subr.bf16.mxu0 0
    %1457 = vmatpush1.bf16.xpose.msra.mxu0 0
    %1458 = vmatprep.subr.bf16.mxu0 0
    %1459 = vmatpush1.bf16.xpose.msra.mxu0 0
    %1460 = vmatprep.subr.bf16.mxu0 0
    %1461 = vmatpush1.bf16.xpose.msra.mxu0 0
    %1462 = vmatprep.subr.bf16.mxu0 0
    %1463 = vmatpush1.bf16.xpose.msra.mxu0 0
    %1464 = vmatprep.mubr.bf16.mxu0 0
    %1465 = vmatmul.mubr.bf16.gmra.mrb[0].mxu0 %v1427
    %v1466 = vpop.f32.mrb[0].mxu0
    %v1467 = vadd.f32 0.0, %v1466
    %v1468 = vpop.f32.mrb[0].mxu0
    %v1469 = vpop.f32.mrb[0].mxu0
    %v1470 = vadd.f32 0.0, %v1469
    %v1471 = vpop.f32.mrb[0].mxu0
    %1472 = vdwg.mxu0
    %v1473 = vsel %vm191, %v1467, -1e+30
    %v1474 = vsel %vm192, %v1470, -1e+30
    %v1475 = vsel %vm205, %v1473, -inf
    %1476 = vmax.xlane.f32.xlu0 %v1475
    %v1477 = vpop.xlane.xlu0 %1476
    %v1478 = vsel %vm205, %v1474, -inf
    %1479 = vmax.xlane.f32.xlu0 %v1478
    %v1480 = vpop.xlane.xlu0 %1479
    %v1481 = vsub.f32 %v1473, %v1477
    %v1482 = vsub.f32 %v1474, %v1480
    %v1483 = vmul.f32 %v1481, 1.442695
    %v1484 = vpow.pop %v1483
    %v1485 = vmul.f32 %v1482, 1.442695
    %v1486 = vpow.pop %v1485
    %v1487 = vsel %vm205, %v1484, 0.0
    %1488 = vadd.xlane.f32.xlu0 %v1487
    %v1489 = vpop.xlane.xlu0 %1488
    %v1490 = vsel %vm205, %v1486, 0.0
    %1491 = vadd.xlane.f32.xlu0 %v1490
    %v1492 = vpop.xlane.xlu0 %1491
    %v1493 = vrcp.pop %v1489
    %v1494 = vrcp.pop %v1492
    %v1495 = vmul.f32 %v1484, %v1493
    %v1496 = vmul.f32 %v1486, %v1494
    %v1497 = vpack.c.bf16 %v1496, %v1495
    %1498 = vrot.lane.b32.xlu0 %v185, 80
    %v1499 = vpop.permute.xlu0 %1498
    %v1502 = vsel %vm205, %v1497, 0
    %1504 = vmatprep.subr.bf16.mxu0 0
    %1505 = vmatpush1.bf16.msra.mxu0 %v1499
    %1506 = vmatprep.subr.bf16.mxu0 0
    %1507 = vmatpush1.bf16.msra.mxu0 0
    %1508 = vmatprep.subr.bf16.mxu0 0
    %1509 = vmatpush1.bf16.msra.mxu0 0
    %1510 = vmatprep.subr.bf16.mxu0 0
    %1511 = vmatpush1.bf16.msra.mxu0 0
    %1512 = vmatprep.subr.bf16.mxu0 0
    %1513 = vmatpush1.bf16.msra.mxu0 0
    %1514 = vmatprep.subr.bf16.mxu0 0
    %1515 = vmatpush1.bf16.msra.mxu0 0
    %1516 = vmatprep.subr.bf16.mxu0 0
    %1517 = vmatpush1.bf16.msra.mxu0 0
    %1518 = vmatprep.subr.bf16.mxu0 0
    %1519 = vmatpush1.bf16.msra.mxu0 0
    %1520 = vmatprep.subr.bf16.mxu0 0
    %1521 = vmatpush1.bf16.msra.mxu0 0
    %1522 = vmatprep.subr.bf16.mxu0 0
    %1523 = vmatpush1.bf16.msra.mxu0 0
    %1524 = vmatprep.subr.bf16.mxu0 0
    %1525 = vmatpush1.bf16.msra.mxu0 0
    %1526 = vmatprep.subr.bf16.mxu0 0
    %1527 = vmatpush1.bf16.msra.mxu0 0
    %1528 = vmatprep.subr.bf16.mxu0 0
    %1529 = vmatpush1.bf16.msra.mxu0 0
    %1530 = vmatprep.subr.bf16.mxu0 0
    %1531 = vmatpush1.bf16.msra.mxu0 0
    %1532 = vmatprep.subr.bf16.mxu0 0
    %1533 = vmatpush1.bf16.msra.mxu0 0
    %1534 = vmatprep.subr.bf16.mxu0 0
    %1535 = vmatpush1.bf16.msra.mxu0 0
    %1536 = vmatprep.mubr.bf16.mxu0 0
    %1537 = vmatmul.mubr.bf16.gmra.mrb[0].mxu0 %v1502
    %v1538 = vpop.f32.mrb[0].mxu0
    %v1539 = vadd.f32 0.0, %v1538
    %v1540 = vpop.f32.mrb[0].mxu0
    %v1541 = vpop.f32.mrb[0].mxu0
    %v1542 = vadd.f32 0.0, %v1541
    %v1543 = vpop.f32.mrb[0].mxu0
    %1544 = vdwg.mxu0
    %v1545 = vpack.c.bf16 %v1542, %v1539
    %v1547 = vsel %vm205, %v1545, 0
    %1549 = vmatprep.subr.bf16.mxu0 0
    %1550 = vmatpush1.bf16.msra.mxu0 %v852
    %1551 = vmatprep.subr.bf16.mxu0 0
    %1552 = vmatpush1.bf16.msra.mxu0 0
    %1553 = vmatprep.subr.bf16.mxu0 0
    %1554 = vmatpush1.bf16.msra.mxu0 0
    %1555 = vmatprep.subr.bf16.mxu0 0
    %1556 = vmatpush1.bf16.msra.mxu0 0
    %1557 = vmatprep.subr.bf16.mxu0 0
    %1558 = vmatpush1.bf16.msra.mxu0 0
    %1559 = vmatprep.subr.bf16.mxu0 0
    %1560 = vmatpush1.bf16.msra.mxu0 0
    %1561 = vmatprep.subr.bf16.mxu0 0
    %1562 = vmatpush1.bf16.msra.mxu0 0
    %1563 = vmatprep.subr.bf16.mxu0 0
    %1564 = vmatpush1.bf16.msra.mxu0 0
    %1565 = vmatprep.subr.bf16.mxu0 0
    %1566 = vmatpush1.bf16.msra.mxu0 0
    %1567 = vmatprep.subr.bf16.mxu0 0
    %1568 = vmatpush1.bf16.msra.mxu0 0
    %1569 = vmatprep.subr.bf16.mxu0 0
    %1570 = vmatpush1.bf16.msra.mxu0 0
    %1571 = vmatprep.subr.bf16.mxu0 0
    %1572 = vmatpush1.bf16.msra.mxu0 0
    %1573 = vmatprep.subr.bf16.mxu0 0
    %1574 = vmatpush1.bf16.msra.mxu0 0
    %1575 = vmatprep.subr.bf16.mxu0 0
    %1576 = vmatpush1.bf16.msra.mxu0 0
    %1577 = vmatprep.subr.bf16.mxu0 0
    %1578 = vmatpush1.bf16.msra.mxu0 0
    %1579 = vmatprep.subr.bf16.mxu0 0
    %1580 = vmatpush1.bf16.msra.mxu0 0
    %1581 = vmatprep.mubr.bf16.mxu0 0
    %1582 = vmatmul.mubr.bf16.gmra.mrb[0].mxu0 %v1547
    %v1583 = vpop.f32.mrb[0].mxu0
    %v1584 = vadd.f32 0.0, %v1583
    %v1585 = vpop.f32.mrb[0].mxu0
    %v1586 = vpop.f32.mrb[0].mxu0
    %v1587 = vadd.f32 0.0, %v1586
    %v1588 = vpop.f32.mrb[0].mxu0
    %1589 = vdwg.mxu0
    %v1590 = vadd.f32 %v1420, %v1584
    %v1591 = vadd.f32 %v1421, %v1587
    %v1592 = vadd.f32 %v1590, %v904
    %v1593 = vadd.f32 %v1591, %v904
    %v1594 = vpack.c.bf16 %v1593, %v1592
    %v1596 = vunpack.c.l.b16 %v1594
    %v1597 = vunpack.c.h.b16 %v1594
    %v1598 = vpack.c.b16 %v1596, %v1596
    %v1599 = vpack.c.b16 %v1597, %v1597
    %1602 = vst.msk [vmem:[#allocation8 + $0x8] sm:$0xf] %vm916, %v1598
    %1603 = vst.msk [vmem:[#allocation8 + $0xc] sm:$0xf] %vm916, %v1599
    // Predicated region
    $region30: #{tpu_custom_call.1} parent=1 // pred_check
      _
    $region31: #{tpu_custom_call.1} parent=1 // pred_check_branch
      %1605 = sbr.rel (0) target = $region33
    $region32: #{tpu_custom_call.1} parent=1 // pred_region
      %s1607 = ssub.s32 256, 256
      %1608 = vsyncadd [#allocation4], %s1607
      %s1609 = sshll.u32 [#allocation8], 4
      %s1610 = int_to_ptr.vmem [resolvable:$true] %s1609
      %1615 = dma.vmem_to_hbm [thread:$0]  %s1610, 256, %s4, [#allocation4], 64, 64, 4
    $region33: #{tpu_custom_call.1} parent=1 // pred_fallthru
      _
    // Predicated region
    $region34: #{tpu_custom_call.1} parent=1 // pred_check
      _
    $region35: #{tpu_custom_call.1} parent=1 // pred_check_branch
      %1617 = sbr.rel (0) target = $region37
    $region36: #{tpu_custom_call.1} parent=1 // pred_region
      %1618 = dma.done [#allocation4], 256
    $region37: #{tpu_custom_call.1} parent=1 // pred_fallthru
      _
    %1619 = vsyncpa [#allocation3], 1
    %1620 = vsyncpa [#allocation6], 1
    %1621 = vsyncpa [#allocation4], 1

</llo_original>
